<compile_context>
chip_gen: v5e
topology: v5e:2x2
jax: 0.10.0
libtpu: 0.0.40
codegen_flags: <defaults>
</compile_context>

<pallas_src>
import functools

import jax
import jax.numpy as jnp
from jax.experimental import pallas as pl
from jax.experimental.pallas import tpu as pltpu


def _lm_step_kernel(ac_ref, h_ref, c_ref, prev_ref,
                    w_gates_ref, b_g_ref, w_out_ref, b_out_ref,
                    lang_ref, h_out_ref, c_out_ref,
                    h_bf16):
    """One decoder step; grid axis 0 walks vocab tiles of w_out."""
    H = h_ref.shape[-1]

    # The LSTM-cell update only depends on the recurrent state + this step's
    # activations, so compute it once (first vocab tile) and keep the new
    # hidden state resident in VMEM scratch for the remaining tiles.
    @pl.when(pl.program_id(0) == 0)
    def _():
        # Fused gate projection: one MXU call with K = A + P + H instead of
        # three latency-bound tiny matmuls. bf16 operands, fp32 accumulation.
        x = jnp.concatenate(
            [ac_ref[...], prev_ref[...], h_ref[...]], axis=-1
        ).astype(jnp.bfloat16)
        gates = jnp.dot(x, w_gates_ref[...],
                        preferred_element_type=jnp.float32) + b_g_ref[...]

        # PyTorch LSTMCell gate order: i, f, g, o.  Elementwise math in fp32
        # (v5e has no bf16 VPU/EUP); sigmoid/tanh route to the EUP and co-issue
        # with the matmuls.
        i_g = jax.nn.sigmoid(gates[:, 0 * H:1 * H])
        f_g = jax.nn.sigmoid(gates[:, 1 * H:2 * H])
        g_g = jnp.tanh(gates[:, 2 * H:3 * H])
        o_g = jax.nn.sigmoid(gates[:, 3 * H:4 * H])

        c_new = f_g * c_ref[...] + i_g * g_g
        h_new = o_g * jnp.tanh(c_new)

        h_out_ref[...] = h_new
        c_out_ref[...] = c_new
        h_bf16[...] = h_new.astype(jnp.bfloat16)

    # Vocab projection for this lane-dense [B, TV] tile.
    lang_ref[...] = (
        jnp.dot(h_bf16[...], w_out_ref[...],
                preferred_element_type=jnp.float32)
        + b_out_ref[...]
    )


def prepare_params(params):
    """One-time plain-JAX glue: fuse the gate weights, cast matmul weights to bf16."""
    w_gates = jnp.concatenate(
        [params["w_ac"], params["w_prev"], params["w_hh"]], axis=0)
    return {
        "w_gates": w_gates.astype(jnp.bfloat16),       # [A+P+H, 4H]
        "b_g":     params["b_g"].astype(jnp.float32),  # [1, 4H]
        "w_out":   params["w_out"].astype(jnp.bfloat16),
        "b_out":   params["b_out"].astype(jnp.float32),
    }


@functools.partial(jax.jit, static_argnames=("vocab_tile",))
def lm_model_step_pallas(acoustic_out, hidden_h, hidden_c, prev_output,
                         prepped, vocab_tile=128):
    """StepWrapper.forward: returns (language_out, next_h, next_c)."""
    B, A = acoustic_out.shape
    H = hidden_h.shape[-1]
    P = prev_output.shape[-1]
    V = prepped["w_out"].shape[-1]
    K = A + P + H

    # Lane/sublane alignment (vreg = 8 sublanes x 128 lanes); non-aligned dims
    # would lower to masked partial stores / relayouts.
    # TODO(synk): pad non-aligned B / H / V inside this wrapper for arbitrary
    # model sizes (pad gate columns per-gate, slice the outputs back).
    assert B % 8 == 0 and A % 128 == 0 and P % 128 == 0
    assert H % 128 == 0 and V % 128 == 0

    tv = min(vocab_tile, V)
    assert V % tv == 0
    grid = (V // tv,)

    const = lambda j: (0, 0)        # resident across the vocab axis
    vtile = lambda j: (0, j)        # walks vocab tiles

    out_shapes = (
        jax.ShapeDtypeStruct((B, V), jnp.float32),   # language_out
        jax.ShapeDtypeStruct((B, H), jnp.float32),   # next hidden h
        jax.ShapeDtypeStruct((B, H), jnp.float32),   # next hidden c
    )

    fn = pl.pallas_call(
        _lm_step_kernel,
        out_shape=out_shapes,
        grid_spec=pltpu.PrefetchScalarGridSpec(
            num_scalar_prefetch=0,
            grid=grid,
            in_specs=[
                pl.BlockSpec((B, A), const),          # acoustic_out
                pl.BlockSpec((B, H), const),          # hidden_h
                pl.BlockSpec((B, H), const),          # hidden_c
                pl.BlockSpec((B, P), const),          # prev_output
                pl.BlockSpec((K, 4 * H), const),      # fused gate weight (bf16)
                pl.BlockSpec((1, 4 * H), const),      # gate bias
                pl.BlockSpec((H, tv), vtile),         # w_out vocab tile (bf16)
                pl.BlockSpec((1, tv), vtile),         # b_out vocab tile
            ],
            out_specs=(
                pl.BlockSpec((B, tv), vtile),         # language_out tile
                pl.BlockSpec((B, H), const),          # next h (resident)
                pl.BlockSpec((B, H), const),          # next c (resident)
            ),
            scratch_shapes=[pltpu.VMEM((B, H), jnp.bfloat16)],
        ),
        # Update the recurrent state in place: hidden_h -> next_h, hidden_c -> next_c.
        input_output_aliases={1: 1, 2: 2},
        compiler_params=pltpu.CompilerParams(
            # The j==0 LSTM update feeds later vocab tiles via VMEM scratch, so
            # this axis must stay "arbitrary" (megacore split would skip j==0
            # on the second core).
            dimension_semantics=("arbitrary",),
            vmem_limit_bytes=32 * 1024 * 1024,
        ),
    )
    # TODO(synk): for autoregressive decode, wrap T steps in one grid=(T, V//tv)
    # kernel (weights with constant index_maps) so weight DMA amortizes over T.
    return fn(acoustic_out, hidden_h, hidden_c, prev_output,
              prepped["w_gates"], prepped["b_g"],
              prepped["w_out"], prepped["b_out"])


def _reference_step(acoustic_out, hidden_h, hidden_c, prev_output, params):
    """Pure-JAX reference using the same bf16-matmul / fp32-accumulate recipe."""
    x = jnp.concatenate([acoustic_out, prev_output, hidden_h], axis=-1)
    w_gates = jnp.concatenate(
        [params["w_ac"], params["w_prev"], params["w_hh"]], axis=0)
    gates = jnp.dot(x.astype(jnp.bfloat16), w_gates.astype(jnp.bfloat16),
                    preferred_element_type=jnp.float32) + params["b_g"]
    H = hidden_h.shape[-1]
    i_g = jax.nn.sigmoid(gates[:, 0 * H:1 * H])
    f_g = jax.nn.sigmoid(gates[:, 1 * H:2 * H])
    g_g = jnp.tanh(gates[:, 2 * H:3 * H])
    o_g = jax.nn.sigmoid(gates[:, 3 * H:4 * H])
    c_new = f_g * hidden_c + i_g * g_g
    h_new = o_g * jnp.tanh(c_new)
    lang = jnp.dot(h_new.astype(jnp.bfloat16),
                   params["w_out"].astype(jnp.bfloat16),
                   preferred_element_type=jnp.float32) + params["b_out"]
    return lang, h_new, c_new


def make_params(key, acoustic_dim, prev_dim, hidden_dim, vocab):
    ks = jax.random.split(key, 6)
    s = 0.1
    return {
        # stored pre-transposed: [in_features, out_features]
        "w_ac":   s * jax.random.normal(ks[0], (acoustic_dim, 4 * hidden_dim), jnp.float32),
        "w_prev": s * jax.random.normal(ks[1], (prev_dim,     4 * hidden_dim), jnp.float32),
        "w_hh":   s * jax.random.normal(ks[2], (hidden_dim,   4 * hidden_dim), jnp.float32),
        "b_g":    s * jax.random.normal(ks[3], (1, 4 * hidden_dim), jnp.float32),
        "w_out":  s * jax.random.normal(ks[4], (hidden_dim, vocab), jnp.float32),
        "b_out":  s * jax.random.normal(ks[5], (1, vocab), jnp.float32),
    }


if __name__ == "__main__":
    # Lane/sublane-dense demo shapes (per perf review): batch padded to the
    # 8-sublane width, feature dims multiples of the 128-lane width.
    B, A, H, V = 8, 128, 128, 256       # batch, acoustic feat, hidden, vocab
    P = V                               # prev_output = previous LM logits

    key = jax.random.PRNGKey(0)
    k_in, k_par = jax.random.split(key)
    ki = jax.random.split(k_in, 4)

    acoustic_out = jax.random.normal(ki[0], (B, A), jnp.float32)
    hidden_h     = jax.random.normal(ki[1], (B, H), jnp.float32)
    hidden_c     = jax.random.normal(ki[2], (B, H), jnp.float32)
    prev_output  = jax.random.normal(ki[3], (B, P), jnp.float32)

    params = make_params(k_par, A, P, H, V)
    prepped = prepare_params(params)

    lang, h_next, c_next = jax.block_until_ready(
        lm_model_step_pallas(acoustic_out, hidden_h, hidden_c, prev_output, prepped))

    # correctness check against a pure-JAX reference (same bf16 matmul recipe)
    lang_r, h_r, c_r = _reference_step(acoustic_out, hidden_h, hidden_c,
                                       prev_output, params)
    assert jnp.allclose(lang,   lang_r, atol=1e-2, rtol=1e-2), "language_out mismatch"
    assert jnp.allclose(h_next, h_r,    atol=1e-2, rtol=1e-2), "hidden_h mismatch"
    assert jnp.allclose(c_next, c_r,    atol=1e-2, rtol=1e-2), "hidden_c mismatch"

    print("KERNEL_OK")
</pallas_src>

<mosaic_0001>
module attributes {stable_mosaic.version = 11 : i64} {
  func.func @_lm_step_kernel(%arg0: i32, %arg1: memref<8x128xf32, #tpu.memory_space<vmem>>, %arg2: memref<8x128xf32, #tpu.memory_space<vmem>>, %arg3: memref<8x128xf32, #tpu.memory_space<vmem>>, %arg4: memref<8x256xf32, #tpu.memory_space<vmem>>, %arg5: memref<512x512xbf16, #tpu.memory_space<vmem>>, %arg6: memref<1x512xf32, #tpu.memory_space<vmem>>, %arg7: memref<128x128xbf16, #tpu.memory_space<vmem>>, %arg8: memref<1x128xf32, #tpu.memory_space<vmem>>, %arg9: memref<8x128xf32, #tpu.memory_space<vmem>>, %arg10: memref<8x128xf32, #tpu.memory_space<vmem>>, %arg11: memref<8x128xf32, #tpu.memory_space<vmem>>, %arg12: memref<8x128xbf16, #tpu.memory_space<vmem>>) attributes {dimension_semantics = [#tpu.dimension_semantics<arbitrary>], iteration_bounds = array<i64: 2>, scalar_prefetch = 0 : i64, scratch_operands = 1 : i64, tpu.core_type = #tpu.core_type<tc>, window_params = [{pipeline_mode = #tpu.pipeline_mode<synchronous>, transform_indices = @transform_0, window_bounds = array<i64: 8, 128>}, {pipeline_mode = #tpu.pipeline_mode<synchronous>, transform_indices = @transform_1, window_bounds = array<i64: 8, 128>}, {pipeline_mode = #tpu.pipeline_mode<synchronous>, transform_indices = @transform_2, window_bounds = array<i64: 8, 128>}, {pipeline_mode = #tpu.pipeline_mode<synchronous>, transform_indices = @transform_3, window_bounds = array<i64: 8, 256>}, {pipeline_mode = #tpu.pipeline_mode<synchronous>, transform_indices = @transform_4, window_bounds = array<i64: 512, 512>}, {pipeline_mode = #tpu.pipeline_mode<synchronous>, transform_indices = @transform_5, window_bounds = array<i64: 1, 512>}, {transform_indices = @transform_6, window_bounds = array<i64: 128, 128>}, {transform_indices = @transform_7, window_bounds = array<i64: 1, 128>}, {transform_indices = @transform_8, window_bounds = array<i64: 8, 128>}, {pipeline_mode = #tpu.pipeline_mode<synchronous>, transform_indices = @transform_9, window_bounds = array<i64: 8, 128>}, {pipeline_mode = #tpu.pipeline_mode<synchronous>, transform_indices = @transform_10, window_bounds = array<i64: 8, 128>}]} {
    %c0_i32 = arith.constant 0 : i32
    %0 = arith.cmpi eq, %arg0, %c0_i32 : i32
    %1 = arith.extui %0 : i1 to i32
    %c0_i32_0 = arith.constant 0 : i32
    %2 = arith.cmpi ne, %1, %c0_i32_0 : i32
    scf.if %2 {
      %c0_8 = arith.constant 0 : index
      %c0_9 = arith.constant 0 : index
      %10 = vector.load %arg1[%c0_8, %c0_9] : memref<8x128xf32, #tpu.memory_space<vmem>>, vector<8x128xf32>
      %c0_10 = arith.constant 0 : index
      %c0_11 = arith.constant 0 : index
      %11 = vector.load %arg4[%c0_10, %c0_11] : memref<8x256xf32, #tpu.memory_space<vmem>>, vector<8x256xf32>
      %c0_12 = arith.constant 0 : index
      %c0_13 = arith.constant 0 : index
      %12 = vector.load %arg2[%c0_12, %c0_13] : memref<8x128xf32, #tpu.memory_space<vmem>>, vector<8x128xf32>
      %13 = tpu.concatenate %10, %11, %12 in 1 : vector<8x128xf32>, vector<8x256xf32>, vector<8x128xf32> -> vector<8x512xf32>
      %14 = arith.truncf %13 : vector<8x512xf32> to vector<8x512xbf16>
      %c0_14 = arith.constant 0 : index
      %c0_15 = arith.constant 0 : index
      %15 = vector.load %arg5[%c0_14, %c0_15] : memref<512x512xbf16, #tpu.memory_space<vmem>>, vector<512x512xbf16>
      %cst_16 = arith.constant dense<0.000000e+00> : vector<8x512xf32>
      %16 = tpu.matmul %14, %15, %cst_16 {dimension_numbers = #tpu.dot_dimension_numbers<[1], [0], [0], [1], [0, 0, 1, 1], [], []>} : vector<8x512xbf16>, vector<512x512xbf16>, vector<8x512xf32> -> vector<8x512xf32>
      %c0_17 = arith.constant 0 : index
      %c0_18 = arith.constant 0 : index
      %17 = vector.load %arg6[%c0_17, %c0_18] : memref<1x512xf32, #tpu.memory_space<vmem>>, vector<1x512xf32>
      %18 = vector.broadcast %17 : vector<1x512xf32> to vector<8x512xf32>
      %19 = arith.addf %16, %18 : vector<8x512xf32>
      %20 = vector.extract_strided_slice %19 {offsets = [0, 0], sizes = [8, 128], strides = [1, 1]} : vector<8x512xf32> to vector<8x128xf32>
      %21 = arith.negf %20 : vector<8x128xf32>
      %22 = math.exp %21 : vector<8x128xf32>
      %cst_19 = arith.constant 1.000000e+00 : f32
      %23 = vector.broadcast %cst_19 : f32 to vector<8x128xf32>
      %24 = arith.addf %23, %22 : vector<8x128xf32>
      %25 = arith.divf %23, %24 : vector<8x128xf32>
      %26 = vector.extract_strided_slice %19 {offsets = [0, 128], sizes = [8, 128], strides = [1, 1]} : vector<8x512xf32> to vector<8x128xf32>
      %27 = arith.negf %26 : vector<8x128xf32>
      %28 = math.exp %27 : vector<8x128xf32>
      %cst_20 = arith.constant 1.000000e+00 : f32
      %29 = vector.broadcast %cst_20 : f32 to vector<8x128xf32>
      %30 = arith.addf %29, %28 : vector<8x128xf32>
      %31 = arith.divf %29, %30 : vector<8x128xf32>
      %32 = vector.extract_strided_slice %19 {offsets = [0, 256], sizes = [8, 128], strides = [1, 1]} : vector<8x512xf32> to vector<8x128xf32>
      %33 = math.tanh %32 : vector<8x128xf32>
      %34 = vector.extract_strided_slice %19 {offsets = [0, 384], sizes = [8, 128], strides = [1, 1]} : vector<8x512xf32> to vector<8x128xf32>
      %35 = arith.negf %34 : vector<8x128xf32>
      %36 = math.exp %35 : vector<8x128xf32>
      %cst_21 = arith.constant 1.000000e+00 : f32
      %37 = vector.broadcast %cst_21 : f32 to vector<8x128xf32>
      %38 = arith.addf %37, %36 : vector<8x128xf32>
      %39 = arith.divf %37, %38 : vector<8x128xf32>
      %c0_22 = arith.constant 0 : index
      %c0_23 = arith.constant 0 : index
      %40 = vector.load %arg3[%c0_22, %c0_23] : memref<8x128xf32, #tpu.memory_space<vmem>>, vector<8x128xf32>
      %41 = arith.mulf %31, %40 : vector<8x128xf32>
      %42 = arith.mulf %25, %33 : vector<8x128xf32>
      %43 = arith.addf %41, %42 : vector<8x128xf32>
      %44 = math.tanh %43 : vector<8x128xf32>
      %45 = arith.mulf %39, %44 : vector<8x128xf32>
      %c0_24 = arith.constant 0 : index
      %c0_25 = arith.constant 0 : index
      %46 = vector.load %arg10[%c0_24, %c0_25] : memref<8x128xf32, #tpu.memory_space<vmem>>, vector<8x128xf32>
      tpu.vector_store %arg10[%c0_24, %c0_25], %45 {strides = array<i32>} : memref<8x128xf32, #tpu.memory_space<vmem>>, vector<8x128xf32>,
      %c0_26 = arith.constant 0 : index
      %c0_27 = arith.constant 0 : index
      %47 = vector.load %arg11[%c0_26, %c0_27] : memref<8x128xf32, #tpu.memory_space<vmem>>, vector<8x128xf32>
      tpu.vector_store %arg11[%c0_26, %c0_27], %43 {strides = array<i32>} : memref<8x128xf32, #tpu.memory_space<vmem>>, vector<8x128xf32>,
      %48 = arith.truncf %45 : vector<8x128xf32> to vector<8x128xbf16>
      %c0_28 = arith.constant 0 : index
      %c0_29 = arith.constant 0 : index
      %49 = vector.load %arg12[%c0_28, %c0_29] : memref<8x128xbf16, #tpu.memory_space<vmem>>, vector<8x128xbf16>
      tpu.vector_store %arg12[%c0_28, %c0_29], %48 {strides = array<i32>} : memref<8x128xbf16, #tpu.memory_space<vmem>>, vector<8x128xbf16>,
    } else {
    }
    %c0 = arith.constant 0 : index
    %c0_1 = arith.constant 0 : index
    %3 = vector.load %arg12[%c0, %c0_1] : memref<8x128xbf16, #tpu.memory_space<vmem>>, vector<8x128xbf16>
    %c0_2 = arith.constant 0 : index
    %c0_3 = arith.constant 0 : index
    %4 = vector.load %arg7[%c0_2, %c0_3] : memref<128x128xbf16, #tpu.memory_space<vmem>>, vector<128x128xbf16>
    %cst = arith.constant dense<0.000000e+00> : vector<8x128xf32>
    %5 = tpu.matmul %3, %4, %cst {dimension_numbers = #tpu.dot_dimension_numbers<[1], [0], [0], [1], [0, 0, 1, 1], [], []>} : vector<8x128xbf16>, vector<128x128xbf16>, vector<8x128xf32> -> vector<8x128xf32>
    %c0_4 = arith.constant 0 : index
    %c0_5 = arith.constant 0 : index
    %6 = vector.load %arg8[%c0_4, %c0_5] : memref<1x128xf32, #tpu.memory_space<vmem>>, vector<1x128xf32>
    %7 = vector.broadcast %6 : vector<1x128xf32> to vector<8x128xf32>
    %8 = arith.addf %5, %7 : vector<8x128xf32>
    %c0_6 = arith.constant 0 : index
    %c0_7 = arith.constant 0 : index
    %9 = vector.load %arg9[%c0_6, %c0_7] : memref<8x128xf32, #tpu.memory_space<vmem>>, vector<8x128xf32>
    tpu.vector_store %arg9[%c0_6, %c0_7], %8 {strides = array<i32>} : memref<8x128xf32, #tpu.memory_space<vmem>>, vector<8x128xf32>,
    return
  }
  func.func @transform_0(%arg0: i32) -> (i32, i32) {
    %c0_i32 = arith.constant 0 : i32
    %c0_i32_0 = arith.constant 0 : i32
    %c0_i32_1 = arith.constant 0 : i32
    return %c0_i32, %c0_i32_0 : i32, i32
  }
  func.func @transform_1(%arg0: i32) -> (i32, i32) {
    %c0_i32 = arith.constant 0 : i32
    %c0_i32_0 = arith.constant 0 : i32
    %c0_i32_1 = arith.constant 0 : i32
    return %c0_i32, %c0_i32_0 : i32, i32
  }
  func.func @transform_2(%arg0: i32) -> (i32, i32) {
    %c0_i32 = arith.constant 0 : i32
    %c0_i32_0 = arith.constant 0 : i32
    %c0_i32_1 = arith.constant 0 : i32
    return %c0_i32, %c0_i32_0 : i32, i32
  }
  func.func @transform_3(%arg0: i32) -> (i32, i32) {
    %c0_i32 = arith.constant 0 : i32
    %c0_i32_0 = arith.constant 0 : i32
    %c0_i32_1 = arith.constant 0 : i32
    return %c0_i32, %c0_i32_0 : i32, i32
  }
  func.func @transform_4(%arg0: i32) -> (i32, i32) {
    %c0_i32 = arith.constant 0 : i32
    %c0_i32_0 = arith.constant 0 : i32
    %c0_i32_1 = arith.constant 0 : i32
    return %c0_i32, %c0_i32_0 : i32, i32
  }
  func.func @transform_5(%arg0: i32) -> (i32, i32) {
    %c0_i32 = arith.constant 0 : i32
    %c0_i32_0 = arith.constant 0 : i32
    %c0_i32_1 = arith.constant 0 : i32
    return %c0_i32, %c0_i32_0 : i32, i32
  }
  func.func @transform_6(%arg0: i32) -> (i32, i32) {
    %c0_i32 = arith.constant 0 : i32
    %c0_i32_0 = arith.constant 0 : i32
    return %c0_i32, %arg0 : i32, i32
  }
  func.func @transform_7(%arg0: i32) -> (i32, i32) {
    %c0_i32 = arith.constant 0 : i32
    %c0_i32_0 = arith.constant 0 : i32
    return %c0_i32, %arg0 : i32, i32
  }
  func.func @transform_8(%arg0: i32) -> (i32, i32) {
    %c0_i32 = arith.constant 0 : i32
    %c0_i32_0 = arith.constant 0 : i32
    return %c0_i32, %arg0 : i32, i32
  }
  func.func @transform_9(%arg0: i32) -> (i32, i32) {
    %c0_i32 = arith.constant 0 : i32
    %c0_i32_0 = arith.constant 0 : i32
    %c0_i32_1 = arith.constant 0 : i32
    return %c0_i32, %c0_i32_0 : i32, i32
  }
  func.func @transform_10(%arg0: i32) -> (i32, i32) {
    %c0_i32 = arith.constant 0 : i32
    %c0_i32_0 = arith.constant 0 : i32
    %c0_i32_1 = arith.constant 0 : i32
    return %c0_i32, %c0_i32_0 : i32, i32
  }
}

</mosaic_0001>

<llo_original>
// kernel: lm_model_step_pallas.1
$region0: #{lm_model_step_pallas.1}
  #allocation0 [shape = 'u32[]', space=smem, size = 0x4, offset = 0x4, fixed_abs, tag = 'smem constant byte address 0x4 - core index']
  #allocation1 [shape = 'u32[72,128]{1,0:T(1,128)}', space=vmem, size = 0x9000, scoped, tag = 'internal scratch']
  #allocation2 [shape = 'bf16[8,128]{1,0:T(8,128)(2,1)}', space=vmem, size = 0x800, scoped, tag = 'scratch operand']
  %s0 = inlined_call_operand.vmem [shape: f32[8,128], index: 0, kind: input, shape index: {}]
  %s1 = inlined_call_operand.hbm [shape: f32[8,128], index: 1, kind: input, shape index: {}, may-alias: {1,9}]
  %s2 = inlined_call_operand.hbm [shape: f32[8,128], index: 2, kind: input, shape index: {}, may-alias: {2,10}]
  %s3 = inlined_call_operand.vmem [shape: f32[8,256], index: 3, kind: input, shape index: {}]
  %s4 = inlined_call_operand.hbm [shape: bf16[512,512], index: 4, kind: input, shape index: {}]
  %s5 = inlined_call_operand.hbm [shape: f32[1,512], index: 5, kind: input, shape index: {}]
  %s6 = inlined_call_operand.hbm [shape: bf16[128,256], index: 6, kind: input, shape index: {}]
  %s7 = inlined_call_operand.hbm [shape: f32[1,256], index: 7, kind: input, shape index: {}]
  %s8 = inlined_call_operand.hbm [shape: f32[8,256], index: 8, kind: output, shape index: {0}]
  %s9 = inlined_call_operand.hbm [shape: f32[8,128], index: 9, kind: output, shape index: {1}, may-alias: {1,9}]
  %s10 = inlined_call_operand.hbm [shape: f32[8,128], index: 10, kind: output, shape index: {2}, may-alias: {2,10}]
  %11 = xla_tuple %s8, %s9, %s10
  %s12 = sld [smem:[#allocation0]]
  $region109: #{lm_model_step_pallas.1} parent=0
    _
  %s14 = ssub.s32 1, %s12
  %s15 = scalar_select 0, %s14, %s12
  $region1: #{lm_model_step_pallas.1} parent=0
    #allocation3 [shape = 'u8[4096]{0}', space=vmem, size = 0x1000, scoped, tag = 'input window, operand 1, single buffered']
    #allocation4 [shape = 's32[2]{0}', space=sflag, size = 0x8, scoped, tag = 'scoped memory for lm_model_step_pallas.1']
    #allocation5 [shape = 's32[2]{0}', space=sflag, size = 0x8, scoped, tag = 'scoped memory for lm_model_step_pallas.1']
    #allocation6 [shape = 'u8[4096]{0}', space=vmem, size = 0x1000, scoped, tag = 'input window, operand 2, single buffered']
    #allocation7 [shape = 's32[1]{0}', space=sflag, size = 0x4, scoped, tag = 'scoped memory for lm_model_step_pallas.1']
    #allocation8 [shape = 'u8[524288]{0}', space=vmem, size = 0x80000, scoped, tag = 'input window, operand 4, single buffered']
    #allocation9 [shape = 'u8[2048]{0}', space=vmem, size = 0x800, scoped, tag = 'input window, operand 5, single buffered']
    #allocation10 [shape = 's32[1]{0}', space=sflag, size = 0x4, scoped, tag = 'scoped memory for lm_model_step_pallas.1']
    #allocation11 [shape = 'u8[65536]{0}', space=vmem, size = 0x10000, scoped, tag = 'input window, operand 6']
    #allocation12 [shape = 'u8[1024]{0}', space=vmem, size = 0x400, scoped, tag = 'input window, operand 7']
    #allocation13 [shape = 'u8[8192]{0}', space=vmem, size = 0x2000, scoped, tag = 'output window, operand 0']
    #allocation14 [shape = 'u8[4096]{0}', space=vmem, size = 0x1000, scoped, tag = 'output window, operand 1, single buffered']
    #allocation15 [shape = 's32[1]{0}', space=sflag, size = 0x4, scoped, tag = 'scoped memory for lm_model_step_pallas.1']
    #allocation16 [shape = 'u8[4096]{0}', space=vmem, size = 0x1000, scoped, tag = 'output window, operand 2, single buffered']
    %16 = vsyncpa [#allocation4], 0
    %17 = vsyncpa [#allocation7], 0
    %18 = vsyncpa [#allocation10], 0
    %19 = vsyncpa [#allocation5], 0
    %s20 = scalar_lea.sflag [#allocation5], 1
    %21 = vsyncpa %s20, 0
    %22 = vsyncpa [#allocation15], 0
    loop: start=0, step=1, limit=4
    $region2: #{lm_model_step_pallas.1} parent=1 // loop_pre_header
      _
    $region3: #{lm_model_step_pallas.1} parent=1 // loop_header
      %s24 = sphi 0, %s28
      %p25 = scmp.ge.s32.totalorder %s24, 4
      %s32 = sphi 0, %s32
      %s34 = sphi 0, %s32
      %s35 = sphi 0, %s34
      %s49 = sphi 0, %s35
      %s53 = sphi 0, %s53
      %s55 = sphi 0, %s53
      %s56 = sphi 0, %s55
      %s70 = sphi 0, %s56
      %s74 = sphi 0, %s74
      %s76 = sphi 0, %s74
      %s77 = sphi 0, %s76
      %s91 = sphi 0, %s77
      %s95 = sphi 0, %s95
      %s97 = sphi 0, %s95
      %s98 = sphi 0, %s97
      %s112 = sphi 0, %s98
      %s116 = sphi 0, %s116
      %s118 = sphi 0, %s116
      %s119 = sphi 0, %s118
      %s133 = sphi 0, %s119
      %s137 = sphi 0, %s137
      %s139 = sphi 0, %s137
      %s140 = sphi 0, %s139
      %s154 = sphi 0, %s140
      %s160 = sphi 0, %s162
      %s163 = sphi 0, %s160
      %s164 = sphi 0, %s163
      %s180 = sphi 0, %s164
      %s186 = sphi 0, %s188
      %s189 = sphi 0, %s186
      %s190 = sphi 0, %s189
      %s206 = sphi 0, %s190
      %s212 = sphi 0, %s214
      %s215 = sphi 0, %s212
      %s216 = sphi 0, %s215
      %s232 = sphi 0, %s216
      %s236 = sphi 0, %s236
      %s238 = sphi 0, %s236
      %s239 = sphi 0, %s238
      %s253 = sphi 0, %s239
      %s257 = sphi 0, %s257
      %s259 = sphi 0, %s257
      %s260 = sphi 0, %s259
      %s274 = sphi 0, %s260
    $region4: #{lm_model_step_pallas.1} parent=1 // loop_header_branch
      %27 = sbr.rel (%p25) target = $region8
    $region5: #{lm_model_step_pallas.1} parent=1 // loop_body
      %s29 = ssub.s32 %s24, 1
      %s30 = ssub.s32 %s24, 2
      %s31 = sadd.s32 %s24, 1
      %s33 = sadd.s32 %s32, 1
      %p36 = scmp.eq.s32.totalorder %s24, 1
      %p37 = scmp.ne.s32.totalorder %s32, %s34
      %p38 = scmp.eq.s32.totalorder %s24, 0
      %p39 = por %p37, %p38
      %p40 = scmp.ne.s32.totalorder %s32, %s34
      %p41 = scmp.eq.s32.totalorder %s29, 1
      %p42 = por %p40, %p41
      %p43 = scmp.ne.s32.totalorder %s34, %s35
      %p44 = scmp.eq.s32.totalorder %s29, 0
      %p45 = por %p43, %p44
      %p46 = scmp.ne.s32.totalorder %s34, %s35
      %p47 = scmp.eq.s32.totalorder %s30, 1
      %p48 = por %p46, %p47
      %p50 = scmp.ne.s32.totalorder %s35, %s49
      %p51 = scmp.eq.s32.totalorder %s30, 0
      %p52 = por %p50, %p51
      %s54 = sadd.s32 %s53, 1
      %p57 = scmp.eq.s32.totalorder %s24, 1
      %p58 = scmp.ne.s32.totalorder %s53, %s55
      %p59 = scmp.eq.s32.totalorder %s24, 0
      %p60 = por %p58, %p59
      %p61 = scmp.ne.s32.totalorder %s53, %s55
      %p62 = scmp.eq.s32.totalorder %s29, 1
      %p63 = por %p61, %p62
      %p64 = scmp.ne.s32.totalorder %s55, %s56
      %p65 = scmp.eq.s32.totalorder %s29, 0
      %p66 = por %p64, %p65
      %p67 = scmp.ne.s32.totalorder %s55, %s56
      %p68 = scmp.eq.s32.totalorder %s30, 1
      %p69 = por %p67, %p68
      %p71 = scmp.ne.s32.totalorder %s56, %s70
      %p72 = scmp.eq.s32.totalorder %s30, 0
      %p73 = por %p71, %p72
      %s75 = sadd.s32 %s74, 1
      %p78 = scmp.eq.s32.totalorder %s24, 1
      %p79 = scmp.ne.s32.totalorder %s74, %s76
      %p80 = scmp.eq.s32.totalorder %s24, 0
      %p81 = por %p79, %p80
      %p82 = scmp.ne.s32.totalorder %s74, %s76
      %p83 = scmp.eq.s32.totalorder %s29, 1
      %p84 = por %p82, %p83
      %p85 = scmp.ne.s32.totalorder %s76, %s77
      %p86 = scmp.eq.s32.totalorder %s29, 0
      %p87 = por %p85, %p86
      %p88 = scmp.ne.s32.totalorder %s76, %s77
      %p89 = scmp.eq.s32.totalorder %s30, 1
      %p90 = por %p88, %p89
      %p92 = scmp.ne.s32.totalorder %s77, %s91
      %p93 = scmp.eq.s32.totalorder %s30, 0
      %p94 = por %p92, %p93
      %s96 = sadd.s32 %s95, 1
      %p99 = scmp.eq.s32.totalorder %s24, 1
      %p100 = scmp.ne.s32.totalorder %s95, %s97
      %p101 = scmp.eq.s32.totalorder %s24, 0
      %p102 = por %p100, %p101
      %p103 = scmp.ne.s32.totalorder %s95, %s97
      %p104 = scmp.eq.s32.totalorder %s29, 1
      %p105 = por %p103, %p104
      %p106 = scmp.ne.s32.totalorder %s97, %s98
      %p107 = scmp.eq.s32.totalorder %s29, 0
      %p108 = por %p106, %p107
      %p109 = scmp.ne.s32.totalorder %s97, %s98
      %p110 = scmp.eq.s32.totalorder %s30, 1
      %p111 = por %p109, %p110
      %p113 = scmp.ne.s32.totalorder %s98, %s112
      %p114 = scmp.eq.s32.totalorder %s30, 0
      %p115 = por %p113, %p114
      %s117 = sadd.s32 %s116, 1
      %p120 = scmp.eq.s32.totalorder %s24, 1
      %p121 = scmp.ne.s32.totalorder %s116, %s118
      %p122 = scmp.eq.s32.totalorder %s24, 0
      %p123 = por %p121, %p122
      %p124 = scmp.ne.s32.totalorder %s116, %s118
      %p125 = scmp.eq.s32.totalorder %s29, 1
      %p126 = por %p124, %p125
      %p127 = scmp.ne.s32.totalorder %s118, %s119
      %p128 = scmp.eq.s32.totalorder %s29, 0
      %p129 = por %p127, %p128
      %p130 = scmp.ne.s32.totalorder %s118, %s119
      %p131 = scmp.eq.s32.totalorder %s30, 1
      %p132 = por %p130, %p131
      %p134 = scmp.ne.s32.totalorder %s119, %s133
      %p135 = scmp.eq.s32.totalorder %s30, 0
      %p136 = por %p134, %p135
      %s138 = sadd.s32 %s137, 1
      %p141 = scmp.eq.s32.totalorder %s24, 1
      %p142 = scmp.ne.s32.totalorder %s137, %s139
      %p143 = scmp.eq.s32.totalorder %s24, 0
      %p144 = por %p142, %p143
      %p145 = scmp.ne.s32.totalorder %s137, %s139
      %p146 = scmp.eq.s32.totalorder %s29, 1
      %p147 = por %p145, %p146
      %p148 = scmp.ne.s32.totalorder %s139, %s140
      %p149 = scmp.eq.s32.totalorder %s29, 0
      %p150 = por %p148, %p149
      %p151 = scmp.ne.s32.totalorder %s139, %s140
      %p152 = scmp.eq.s32.totalorder %s30, 1
      %p153 = por %p151, %p152
      %p155 = scmp.ne.s32.totalorder %s140, %s154
      %p156 = scmp.eq.s32.totalorder %s30, 0
      %p157 = por %p155, %p156
      %s158 = ssub.s32 %s24, %s31
      %p159 = scmp.eq.s32.totalorder %s158, 0
      %s161 = sadd.s32 %s160, 1
      %s162 = scalar_select %p159, %s160, %s161
      %p165 = pneg %p159
      %p166 = scmp.eq.s32.totalorder %s24, 1
      %p167 = por %p165, %p166
      %p168 = scmp.ne.s32.totalorder %s160, %s163
      %p169 = scmp.eq.s32.totalorder %s24, 0
      %p170 = por %p168, %p169
      %p171 = scmp.ne.s32.totalorder %s160, %s163
      %p172 = scmp.eq.s32.totalorder %s29, 1
      %p173 = por %p171, %p172
      %p174 = scmp.ne.s32.totalorder %s163, %s164
      %p175 = scmp.eq.s32.totalorder %s29, 0
      %p176 = por %p174, %p175
      %p177 = scmp.ne.s32.totalorder %s163, %s164
      %p178 = scmp.eq.s32.totalorder %s30, 1
      %p179 = por %p177, %p178
      %p181 = scmp.ne.s32.totalorder %s164, %s180
      %p182 = scmp.eq.s32.totalorder %s30, 0
      %p183 = por %p181, %p182
      %s184 = ssub.s32 %s24, %s31
      %p185 = scmp.eq.s32.totalorder %s184, 0
      %s187 = sadd.s32 %s186, 1
      %s188 = scalar_select %p185, %s186, %s187
      %p191 = pneg %p185
      %p192 = scmp.eq.s32.totalorder %s24, 1
      %p193 = por %p191, %p192
      %p194 = scmp.ne.s32.totalorder %s186, %s189
      %p195 = scmp.eq.s32.totalorder %s24, 0
      %p196 = por %p194, %p195
      %p197 = scmp.ne.s32.totalorder %s186, %s189
      %p198 = scmp.eq.s32.totalorder %s29, 1
      %p199 = por %p197, %p198
      %p200 = scmp.ne.s32.totalorder %s189, %s190
      %p201 = scmp.eq.s32.totalorder %s29, 0
      %p202 = por %p200, %p201
      %p203 = scmp.ne.s32.totalorder %s189, %s190
      %p204 = scmp.eq.s32.totalorder %s30, 1
      %p205 = por %p203, %p204
      %p207 = scmp.ne.s32.totalorder %s190, %s206
      %p208 = scmp.eq.s32.totalorder %s30, 0
      %p209 = por %p207, %p208
      %s210 = ssub.s32 %s24, %s31
      %p211 = scmp.eq.s32.totalorder %s210, 0
      %s213 = sadd.s32 %s212, 1
      %s214 = scalar_select %p211, %s212, %s213
      %p217 = pneg %p211
      %p218 = scmp.eq.s32.totalorder %s24, 1
      %p219 = por %p217, %p218
      %p220 = scmp.ne.s32.totalorder %s212, %s215
      %p221 = scmp.eq.s32.totalorder %s24, 0
      %p222 = por %p220, %p221
      %p223 = scmp.ne.s32.totalorder %s212, %s215
      %p224 = scmp.eq.s32.totalorder %s29, 1
      %p225 = por %p223, %p224
      %p226 = scmp.ne.s32.totalorder %s215, %s216
      %p227 = scmp.eq.s32.totalorder %s29, 0
      %p228 = por %p226, %p227
      %p229 = scmp.ne.s32.totalorder %s215, %s216
      %p230 = scmp.eq.s32.totalorder %s30, 1
      %p231 = por %p229, %p230
      %p233 = scmp.ne.s32.totalorder %s216, %s232
      %p234 = scmp.eq.s32.totalorder %s30, 0
      %p235 = por %p233, %p234
      %s237 = sadd.s32 %s236, 1
      %p240 = scmp.eq.s32.totalorder %s24, 1
      %p241 = scmp.ne.s32.totalorder %s236, %s238
      %p242 = scmp.eq.s32.totalorder %s24, 0
      %p243 = por %p241, %p242
      %p244 = scmp.ne.s32.totalorder %s236, %s238
      %p245 = scmp.eq.s32.totalorder %s29, 1
      %p246 = por %p244, %p245
      %p247 = scmp.ne.s32.totalorder %s238, %s239
      %p248 = scmp.eq.s32.totalorder %s29, 0
      %p249 = por %p247, %p248
      %p250 = scmp.ne.s32.totalorder %s238, %s239
      %p251 = scmp.eq.s32.totalorder %s30, 1
      %p252 = por %p250, %p251
      %p254 = scmp.ne.s32.totalorder %s239, %s253
      %p255 = scmp.eq.s32.totalorder %s30, 0
      %p256 = por %p254, %p255
      %s258 = sadd.s32 %s257, 1
      %p261 = scmp.eq.s32.totalorder %s24, 1
      %p262 = scmp.ne.s32.totalorder %s257, %s259
      %p263 = scmp.eq.s32.totalorder %s24, 0
      %p264 = por %p262, %p263
      %p265 = scmp.ne.s32.totalorder %s257, %s259
      %p266 = scmp.eq.s32.totalorder %s29, 1
      %p267 = por %p265, %p266
      %p268 = scmp.ne.s32.totalorder %s259, %s260
      %p269 = scmp.eq.s32.totalorder %s29, 0
      %p270 = por %p268, %p269
      %p271 = scmp.ne.s32.totalorder %s259, %s260
      %p272 = scmp.eq.s32.totalorder %s30, 1
      %p273 = por %p271, %p272
      %p275 = scmp.ne.s32.totalorder %s260, %s274
      %p276 = scmp.eq.s32.totalorder %s30, 0
      %p277 = por %p275, %p276
      %p278 = scmp.le.s32.totalorder 1, %s24
      %p279 = scmp.lt.s32.totalorder %s24, 3
      %p280 = pnand %p278, %p279
      %p281 = pneg %p280
      // Predicated region
      $region9: #{lm_model_step_pallas.1} parent=5 // pred_check
        _
      $region10: #{lm_model_step_pallas.1} parent=5 // pred_check_branch
        %283 = sbr.rel (%p280) target = $region12
      $region11: #{lm_model_step_pallas.1} parent=5 // pred_region
        %s284 = ssub.s32 %s24, 1
        // Predicated region
        $region13: #{lm_model_step_pallas.1} parent=11 // pred_check
          %p285 = pneg %p45
        $region14: #{lm_model_step_pallas.1} parent=11 // pred_check_branch
          %287 = sbr.rel (%p285) target = $region16
        $region15: #{lm_model_step_pallas.1} parent=11 // pred_region
          _
        $region16: #{lm_model_step_pallas.1} parent=11 // pred_fallthru
          _
        // Predicated region
        $region17: #{lm_model_step_pallas.1} parent=11 // pred_check
          %p288 = pneg %p66
        $region18: #{lm_model_step_pallas.1} parent=11 // pred_check_branch
          %290 = sbr.rel (%p288) target = $region20
        $region19: #{lm_model_step_pallas.1} parent=11 // pred_region
          %292 = vsyncadd [#allocation4], 0
          %s294 = sshll.u32 %s1, 4
          %s295 = int_to_ptr.hbm [resolvable:$true] %s294
          %s296 = sshll.u32 [#allocation3], 4
          %s297 = int_to_ptr.vmem [resolvable:$true] %s296
          %299 = dma.hbm_to_vmem [thread:$0]  %s295, 128, %s297, [#allocation4]
        $region20: #{lm_model_step_pallas.1} parent=11 // pred_fallthru
          _
        // Predicated region
        $region21: #{lm_model_step_pallas.1} parent=11 // pred_check
          %p300 = pneg %p87
        $region22: #{lm_model_step_pallas.1} parent=11 // pred_check_branch
          %302 = sbr.rel (%p300) target = $region24
        $region23: #{lm_model_step_pallas.1} parent=11 // pred_region
          %304 = vsyncadd [#allocation7], 0
          %s306 = sshll.u32 %s2, 4
          %s307 = int_to_ptr.hbm [resolvable:$true] %s306
          %s308 = sshll.u32 [#allocation6], 4
          %s309 = int_to_ptr.vmem [resolvable:$true] %s308
          %311 = dma.hbm_to_vmem [thread:$0]  %s307, 128, %s309, [#allocation7]
        $region24: #{lm_model_step_pallas.1} parent=11 // pred_fallthru
          _
        // Predicated region
        $region25: #{lm_model_step_pallas.1} parent=11 // pred_check
          %p312 = pneg %p108
        $region26: #{lm_model_step_pallas.1} parent=11 // pred_check_branch
          %314 = sbr.rel (%p312) target = $region28
        $region27: #{lm_model_step_pallas.1} parent=11 // pred_region
          _
        $region28: #{lm_model_step_pallas.1} parent=11 // pred_fallthru
          _
        // Predicated region
        $region29: #{lm_model_step_pallas.1} parent=11 // pred_check
          %p315 = pneg %p129
        $region30: #{lm_model_step_pallas.1} parent=11 // pred_check_branch
          %317 = sbr.rel (%p315) target = $region32
        $region31: #{lm_model_step_pallas.1} parent=11 // pred_region
          %319 = vsyncadd [#allocation7], 0
          %s320 = sshll.u32 %s4, 4
          %s321 = int_to_ptr.hbm [resolvable:$true] %s320
          %s322 = sshll.u32 [#allocation8], 4
          %s323 = int_to_ptr.vmem [resolvable:$true] %s322
          %328 = dma.hbm_to_vmem [thread:$0]  %s321, 16384, %s323, [#allocation7], 256, 256, 16
        $region32: #{lm_model_step_pallas.1} parent=11 // pred_fallthru
          _
        // Predicated region
        $region33: #{lm_model_step_pallas.1} parent=11 // pred_check
          %p329 = pneg %p150
        $region34: #{lm_model_step_pallas.1} parent=11 // pred_check_branch
          %331 = sbr.rel (%p329) target = $region36
        $region35: #{lm_model_step_pallas.1} parent=11 // pred_region
          %333 = vsyncadd [#allocation10], 0
          %s335 = sshll.u32 %s5, 4
          %s336 = int_to_ptr.hbm [resolvable:$true] %s335
          %s337 = sshll.u32 [#allocation9], 4
          %s338 = int_to_ptr.vmem [resolvable:$true] %s337
          %340 = dma.hbm_to_vmem [thread:$0]  %s336, 64, %s338, [#allocation10]
        $region36: #{lm_model_step_pallas.1} parent=11 // pred_fallthru
          _
      $region12: #{lm_model_step_pallas.1} parent=5 // pred_fallthru
        _
      %p341 = scmp.lt.s32.totalorder %s24, 2
      // Predicated region
      $region37: #{lm_model_step_pallas.1} parent=5 // pred_check
        %p342 = pneg %p341
      $region38: #{lm_model_step_pallas.1} parent=5 // pred_check_branch
        %344 = sbr.rel (%p342) target = $region40
      $region39: #{lm_model_step_pallas.1} parent=5 // pred_region
        // Predicated region
        $region41: #{lm_model_step_pallas.1} parent=39 // pred_check
          %p345 = pneg %p170
        $region42: #{lm_model_step_pallas.1} parent=39 // pred_check_branch
          %347 = sbr.rel (%p345) target = $region44
        $region43: #{lm_model_step_pallas.1} parent=39 // pred_region
          %s348 = sand.u32 %s24, 1
          %s349 = scalar_lea.sflag [#allocation4], %s348
          %s350 = sand.u32 %s160, 1
          %s351 = smul.addr %s350, 64
          %s352 = scalar_lea.vmem [#allocation11], %s351
          %354 = vsyncadd %s349, 0
          %s355 = smul.addr %s24, 4
          %s356 = scalar_lea.hbm %s6, %s355
          %s357 = sshll.u32 %s356, 4
          %s358 = int_to_ptr.hbm [resolvable:$true] %s357
          %s359 = sshll.u32 %s352, 4
          %s360 = int_to_ptr.vmem [resolvable:$true] %s359
          %365 = dma.hbm_to_vmem [thread:$0]  %s358, 1024, %s360, %s349, 128, 64, 4
        $region44: #{lm_model_step_pallas.1} parent=39 // pred_fallthru
          _
        // Predicated region
        $region45: #{lm_model_step_pallas.1} parent=39 // pred_check
          %p366 = pneg %p196
        $region46: #{lm_model_step_pallas.1} parent=39 // pred_check_branch
          %368 = sbr.rel (%p366) target = $region48
        $region47: #{lm_model_step_pallas.1} parent=39 // pred_region
          %s369 = sand.u32 %s24, 1
          %s370 = scalar_lea.sflag [#allocation4], %s369
          %s371 = sand.u32 %s186, 1
          %s372 = scalar_lea.vmem [#allocation12], %s371
          %374 = vsyncadd %s370, 0
          %s375 = scalar_lea.hbm %s7, %s24
          %s377 = sshll.u32 %s375, 4
          %s378 = int_to_ptr.hbm [resolvable:$true] %s377
          %s379 = sshll.u32 %s372, 4
          %s380 = int_to_ptr.vmem [resolvable:$true] %s379
          %382 = dma.hbm_to_vmem [thread:$0]  %s378, 16, %s380, %s370
        $region48: #{lm_model_step_pallas.1} parent=39 // pred_fallthru
          _
      $region40: #{lm_model_step_pallas.1} parent=5 // pred_fallthru
        _
      %p383 = scmp.le.s32.totalorder 1, %s24
      %p384 = scmp.lt.s32.totalorder %s24, 3
      %p385 = pnand %p383, %p384
      %p386 = pneg %p385
      // Predicated region
      $region49: #{lm_model_step_pallas.1} parent=5 // pred_check
        _
      $region50: #{lm_model_step_pallas.1} parent=5 // pred_check_branch
        %388 = sbr.rel (%p385) target = $region52
      $region51: #{lm_model_step_pallas.1} parent=5 // pred_region
        %s389 = ssub.s32 %s24, 1
        // Predicated region
        $region53: #{lm_model_step_pallas.1} parent=51 // pred_check
          %p390 = pneg %p66
        $region54: #{lm_model_step_pallas.1} parent=51 // pred_check_branch
          %392 = sbr.rel (%p390) target = $region56
        $region55: #{lm_model_step_pallas.1} parent=51 // pred_region
          %394 = dma.done [#allocation4], 128
        $region56: #{lm_model_step_pallas.1} parent=51 // pred_fallthru
          _
        // Predicated region
        $region57: #{lm_model_step_pallas.1} parent=51 // pred_check
          %p395 = pneg %p87
        $region58: #{lm_model_step_pallas.1} parent=51 // pred_check_branch
          %397 = sbr.rel (%p395) target = $region60
        $region59: #{lm_model_step_pallas.1} parent=51 // pred_region
          %399 = dma.done [#allocation7], 128
        $region60: #{lm_model_step_pallas.1} parent=51 // pred_fallthru
          _
        // Predicated region
        $region61: #{lm_model_step_pallas.1} parent=51 // pred_check
          %p400 = pneg %p129
        $region62: #{lm_model_step_pallas.1} parent=51 // pred_check_branch
          %402 = sbr.rel (%p400) target = $region64
        $region63: #{lm_model_step_pallas.1} parent=51 // pred_region
          %404 = dma.done [#allocation7], 16384
        $region64: #{lm_model_step_pallas.1} parent=51 // pred_fallthru
          _
        // Predicated region
        $region65: #{lm_model_step_pallas.1} parent=51 // pred_check
          %p405 = pneg %p150
        $region66: #{lm_model_step_pallas.1} parent=51 // pred_check_branch
          %407 = sbr.rel (%p405) target = $region68
        $region67: #{lm_model_step_pallas.1} parent=51 // pred_region
          %409 = dma.done [#allocation10], 64
        $region68: #{lm_model_step_pallas.1} parent=51 // pred_fallthru
          _
        %s410 = sand.u32 %s29, 1
        %s411 = scalar_lea.sflag [#allocation4], %s410
        %s412 = sand.u32 %s163, 1
        %s413 = smul.addr %s412, 64
        %s414 = scalar_lea.vmem [#allocation11], %s413
        // Predicated region
        $region69: #{lm_model_step_pallas.1} parent=51 // pred_check
          %p415 = pneg %p176
        $region70: #{lm_model_step_pallas.1} parent=51 // pred_check_branch
          %417 = sbr.rel (%p415) target = $region72
        $region71: #{lm_model_step_pallas.1} parent=51 // pred_region
          %419 = dma.done %s411, 1024
        $region72: #{lm_model_step_pallas.1} parent=51 // pred_fallthru
          _
        %s420 = sand.u32 %s29, 1
        %s421 = scalar_lea.sflag [#allocation4], %s420
        %s422 = sand.u32 %s189, 1
        %s423 = scalar_lea.vmem [#allocation12], %s422
        // Predicated region
        $region73: #{lm_model_step_pallas.1} parent=51 // pred_check
          %p424 = pneg %p202
        $region74: #{lm_model_step_pallas.1} parent=51 // pred_check_branch
          %426 = sbr.rel (%p424) target = $region76
        $region75: #{lm_model_step_pallas.1} parent=51 // pred_region
          %428 = dma.done %s421, 16
        $region76: #{lm_model_step_pallas.1} parent=51 // pred_fallthru
          _
        %p429 = pneg %p45
        %p430 = pneg %p42
        %p431 = pneg %p66
        %p432 = pneg %p63
        %p433 = pneg %p87
        %p434 = pneg %p84
        %p435 = pneg %p108
        %p436 = pneg %p105
        %p437 = pneg %p129
        %p438 = pneg %p126
        %p439 = pneg %p150
        %p440 = pneg %p147
        %s441 = sand.u32 %s29, 1
        %s442 = scalar_lea.sflag [#allocation4], %s441
        %s443 = sand.u32 %s163, 1
        %s444 = smul.addr %s443, 64
        %s445 = scalar_lea.vmem [#allocation11], %s444
        %p446 = pneg %p176
        %p447 = pneg %p173
        %s448 = sand.u32 %s29, 1
        %s449 = scalar_lea.sflag [#allocation4], %s448
        %s450 = sand.u32 %s189, 1
        %s451 = scalar_lea.vmem [#allocation12], %s450
        %p452 = pneg %p202
        %p453 = pneg %p199
        %p454 = pneg %p228
        %p455 = pneg %p225
        %s456 = sand.u32 %s215, 1
        %s457 = scalar_lea.sflag [#allocation5], %s456
        %s458 = sand.u32 %s215, 1
        %s459 = smul.addr %s458, 8
        %s460 = scalar_lea.vmem [#allocation13], %s459
        %p461 = pneg %p249
        %p462 = pneg %p246
        %p463 = pneg %p270
        %p464 = pneg %p267
        %p465 = scmp.eq.s32.totalorder %s29, 0
        // Predicated region
        $region77: #{lm_model_step_pallas.1} parent=51 // pred_check
          %p466 = pneg %p465
        $region78: #{lm_model_step_pallas.1} parent=51 // pred_check_branch
          %468 = sbr.rel (%p466) target = $region80
        $region79: #{lm_model_step_pallas.1} parent=51 // pred_region
          %v469 = vld [vmem:[%s0] sm:$0xff]
          %v470 = vld [vmem:[%s3] sm:$0xff]
          %v471 = vld [vmem:[%s3 + $0x8] sm:$0xff]
          %v472 = vld [vmem:[#allocation3] sm:$0xff]
          %v473 = vpack.c.bf16 %v469, %v469
          %v474 = vpack.c.bf16 %v470, %v470
          %v475 = vpack.c.bf16 %v471, %v471
          %v476 = vpack.c.bf16 %v472, %v472
          %v477 = vld [vmem:[#allocation8] sm:$0xff]
          %v478 = vld [vmem:[#allocation8 + $0x8] sm:$0xff]
          %v479 = vld [vmem:[#allocation8 + $0x10] sm:$0xff]
          %v480 = vld [vmem:[#allocation8 + $0x18] sm:$0xff]
          %v481 = vld [vmem:[#allocation8 + $0x20] sm:$0xff]
          %v482 = vld [vmem:[#allocation8 + $0x28] sm:$0xff]
          %v483 = vld [vmem:[#allocation8 + $0x30] sm:$0xff]
          %v484 = vld [vmem:[#allocation8 + $0x38] sm:$0xff]
          %v485 = vld [vmem:[#allocation8 + $0x40] sm:$0xff]
          %v486 = vld [vmem:[#allocation8 + $0x48] sm:$0xff]
          %v487 = vld [vmem:[#allocation8 + $0x50] sm:$0xff]
          %v488 = vld [vmem:[#allocation8 + $0x58] sm:$0xff]
          %v489 = vld [vmem:[#allocation8 + $0x60] sm:$0xff]
          %v490 = vld [vmem:[#allocation8 + $0x68] sm:$0xff]
          %v491 = vld [vmem:[#allocation8 + $0x70] sm:$0xff]
          %v492 = vld [vmem:[#allocation8 + $0x78] sm:$0xff]
          %v493 = vld [vmem:[#allocation8 + $0x80] sm:$0xff]
          %v494 = vld [vmem:[#allocation8 + $0x88] sm:$0xff]
          %v495 = vld [vmem:[#allocation8 + $0x90] sm:$0xff]
          %v496 = vld [vmem:[#allocation8 + $0x98] sm:$0xff]
          %v497 = vld [vmem:[#allocation8 + $0xa0] sm:$0xff]
          %v498 = vld [vmem:[#allocation8 + $0xa8] sm:$0xff]
          %v499 = vld [vmem:[#allocation8 + $0xb0] sm:$0xff]
          %v500 = vld [vmem:[#allocation8 + $0xb8] sm:$0xff]
          %v501 = vld [vmem:[#allocation8 + $0xc0] sm:$0xff]
          %v502 = vld [vmem:[#allocation8 + $0xc8] sm:$0xff]
          %v503 = vld [vmem:[#allocation8 + $0xd0] sm:$0xff]
          %v504 = vld [vmem:[#allocation8 + $0xd8] sm:$0xff]
          %v505 = vld [vmem:[#allocation8 + $0xe0] sm:$0xff]
          %v506 = vld [vmem:[#allocation8 + $0xe8] sm:$0xff]
          %v507 = vld [vmem:[#allocation8 + $0xf0] sm:$0xff]
          %v508 = vld [vmem:[#allocation8 + $0xf8] sm:$0xff]
          %v509 = vld [vmem:[#allocation8 + $0x100] sm:$0xff]
          %v510 = vld [vmem:[#allocation8 + $0x108] sm:$0xff]
          %v511 = vld [vmem:[#allocation8 + $0x110] sm:$0xff]
          %v512 = vld [vmem:[#allocation8 + $0x118] sm:$0xff]
          %v513 = vld [vmem:[#allocation8 + $0x120] sm:$0xff]
          %v514 = vld [vmem:[#allocation8 + $0x128] sm:$0xff]
          %v515 = vld [vmem:[#allocation8 + $0x130] sm:$0xff]
          %v516 = vld [vmem:[#allocation8 + $0x138] sm:$0xff]
          %v517 = vld [vmem:[#allocation8 + $0x140] sm:$0xff]
          %v518 = vld [vmem:[#allocation8 + $0x148] sm:$0xff]
          %v519 = vld [vmem:[#allocation8 + $0x150] sm:$0xff]
          %v520 = vld [vmem:[#allocation8 + $0x158] sm:$0xff]
          %v521 = vld [vmem:[#allocation8 + $0x160] sm:$0xff]
          %v522 = vld [vmem:[#allocation8 + $0x168] sm:$0xff]
          %v523 = vld [vmem:[#allocation8 + $0x170] sm:$0xff]
          %v524 = vld [vmem:[#allocation8 + $0x178] sm:$0xff]
          %v525 = vld [vmem:[#allocation8 + $0x180] sm:$0xff]
          %v526 = vld [vmem:[#allocation8 + $0x188] sm:$0xff]
          %v527 = vld [vmem:[#allocation8 + $0x190] sm:$0xff]
          %v528 = vld [vmem:[#allocation8 + $0x198] sm:$0xff]
          %v529 = vld [vmem:[#allocation8 + $0x1a0] sm:$0xff]
          %v530 = vld [vmem:[#allocation8 + $0x1a8] sm:$0xff]
          %v531 = vld [vmem:[#allocation8 + $0x1b0] sm:$0xff]
          %v532 = vld [vmem:[#allocation8 + $0x1b8] sm:$0xff]
          %v533 = vld [vmem:[#allocation8 + $0x1c0] sm:$0xff]
          %v534 = vld [vmem:[#allocation8 + $0x1c8] sm:$0xff]
          %v535 = vld [vmem:[#allocation8 + $0x1d0] sm:$0xff]
          %v536 = vld [vmem:[#allocation8 + $0x1d8] sm:$0xff]
          %v537 = vld [vmem:[#allocation8 + $0x1e0] sm:$0xff]
          %v538 = vld [vmem:[#allocation8 + $0x1e8] sm:$0xff]
          %v539 = vld [vmem:[#allocation8 + $0x1f0] sm:$0xff]
          %v540 = vld [vmem:[#allocation8 + $0x1f8] sm:$0xff]
          %v541 = vld [vmem:[#allocation8 + $0x200] sm:$0xff]
          %v542 = vld [vmem:[#allocation8 + $0x208] sm:$0xff]
          %v543 = vld [vmem:[#allocation8 + $0x210] sm:$0xff]
          %v544 = vld [vmem:[#allocation8 + $0x218] sm:$0xff]
          %v545 = vld [vmem:[#allocation8 + $0x220] sm:$0xff]
          %v546 = vld [vmem:[#allocation8 + $0x228] sm:$0xff]
          %v547 = vld [vmem:[#allocation8 + $0x230] sm:$0xff]
          %v548 = vld [vmem:[#allocation8 + $0x238] sm:$0xff]
          %v549 = vld [vmem:[#allocation8 + $0x240] sm:$0xff]
          %v550 = vld [vmem:[#allocation8 + $0x248] sm:$0xff]
          %v551 = vld [vmem:[#allocation8 + $0x250] sm:$0xff]
          %v552 = vld [vmem:[#allocation8 + $0x258] sm:$0xff]
          %v553 = vld [vmem:[#allocation8 + $0x260] sm:$0xff]
          %v554 = vld [vmem:[#allocation8 + $0x268] sm:$0xff]
          %v555 = vld [vmem:[#allocation8 + $0x270] sm:$0xff]
          %v556 = vld [vmem:[#allocation8 + $0x278] sm:$0xff]
          %v557 = vld [vmem:[#allocation8 + $0x280] sm:$0xff]
          %v558 = vld [vmem:[#allocation8 + $0x288] sm:$0xff]
          %v559 = vld [vmem:[#allocation8 + $0x290] sm:$0xff]
          %v560 = vld [vmem:[#allocation8 + $0x298] sm:$0xff]
          %v561 = vld [vmem:[#allocation8 + $0x2a0] sm:$0xff]
          %v562 = vld [vmem:[#allocation8 + $0x2a8] sm:$0xff]
          %v563 = vld [vmem:[#allocation8 + $0x2b0] sm:$0xff]
          %v564 = vld [vmem:[#allocation8 + $0x2b8] sm:$0xff]
          %v565 = vld [vmem:[#allocation8 + $0x2c0] sm:$0xff]
          %v566 = vld [vmem:[#allocation8 + $0x2c8] sm:$0xff]
          %v567 = vld [vmem:[#allocation8 + $0x2d0] sm:$0xff]
          %v568 = vld [vmem:[#allocation8 + $0x2d8] sm:$0xff]
          %v569 = vld [vmem:[#allocation8 + $0x2e0] sm:$0xff]
          %v570 = vld [vmem:[#allocation8 + $0x2e8] sm:$0xff]
          %v571 = vld [vmem:[#allocation8 + $0x2f0] sm:$0xff]
          %v572 = vld [vmem:[#allocation8 + $0x2f8] sm:$0xff]
          %v573 = vld [vmem:[#allocation8 + $0x300] sm:$0xff]
          %v574 = vld [vmem:[#allocation8 + $0x308] sm:$0xff]
          %v575 = vld [vmem:[#allocation8 + $0x310] sm:$0xff]
          %v576 = vld [vmem:[#allocation8 + $0x318] sm:$0xff]
          %v577 = vld [vmem:[#allocation8 + $0x320] sm:$0xff]
          %v578 = vld [vmem:[#allocation8 + $0x328] sm:$0xff]
          %v579 = vld [vmem:[#allocation8 + $0x330] sm:$0xff]
          %v580 = vld [vmem:[#allocation8 + $0x338] sm:$0xff]
          %v581 = vld [vmem:[#allocation8 + $0x340] sm:$0xff]
          %v582 = vld [vmem:[#allocation8 + $0x348] sm:$0xff]
          %v583 = vld [vmem:[#allocation8 + $0x350] sm:$0xff]
          %v584 = vld [vmem:[#allocation8 + $0x358] sm:$0xff]
          %v585 = vld [vmem:[#allocation8 + $0x360] sm:$0xff]
          %v586 = vld [vmem:[#allocation8 + $0x368] sm:$0xff]
          %v587 = vld [vmem:[#allocation8 + $0x370] sm:$0xff]
          %v588 = vld [vmem:[#allocation8 + $0x378] sm:$0xff]
          %v589 = vld [vmem:[#allocation8 + $0x380] sm:$0xff]
          %v590 = vld [vmem:[#allocation8 + $0x388] sm:$0xff]
          %v591 = vld [vmem:[#allocation8 + $0x390] sm:$0xff]
          %v592 = vld [vmem:[#allocation8 + $0x398] sm:$0xff]
          %v593 = vld [vmem:[#allocation8 + $0x3a0] sm:$0xff]
          %v594 = vld [vmem:[#allocation8 + $0x3a8] sm:$0xff]
          %v595 = vld [vmem:[#allocation8 + $0x3b0] sm:$0xff]
          %v596 = vld [vmem:[#allocation8 + $0x3b8] sm:$0xff]
          %v597 = vld [vmem:[#allocation8 + $0x3c0] sm:$0xff]
          %v598 = vld [vmem:[#allocation8 + $0x3c8] sm:$0xff]
          %v599 = vld [vmem:[#allocation8 + $0x3d0] sm:$0xff]
          %v600 = vld [vmem:[#allocation8 + $0x3d8] sm:$0xff]
          %v601 = vld [vmem:[#allocation8 + $0x3e0] sm:$0xff]
          %v602 = vld [vmem:[#allocation8 + $0x3e8] sm:$0xff]
          %v603 = vld [vmem:[#allocation8 + $0x3f0] sm:$0xff]
          %v604 = vld [vmem:[#allocation8 + $0x3f8] sm:$0xff]
          %v605 = vld [vmem:[#allocation9] sm:$0xf]
          %v607 = vperm.slane %v605, 0
          %v608 = vperm.slane %v605, 1
          %v609 = vperm.slane %v605, 2
          %v610 = vperm.slane %v605, 3
          %v743 = vunpack.c.l.b16 %v477
          %v744 = vunpack.c.h.b16 %v477
          %v745 = vunpack.c.l.b16 %v478
          %v746 = vunpack.c.h.b16 %v478
          %v747 = vunpack.c.l.b16 %v479
          %v748 = vunpack.c.h.b16 %v479
          %v749 = vunpack.c.l.b16 %v480
          %v750 = vunpack.c.h.b16 %v480
          %v751 = vunpack.c.l.b16 %v481
          %v752 = vunpack.c.h.b16 %v481
          %v753 = vunpack.c.l.b16 %v482
          %v754 = vunpack.c.h.b16 %v482
          %v755 = vunpack.c.l.b16 %v483
          %v756 = vunpack.c.h.b16 %v483
          %v757 = vunpack.c.l.b16 %v484
          %v758 = vunpack.c.h.b16 %v484
          %v759 = vunpack.c.l.b16 %v485
          %v760 = vunpack.c.h.b16 %v485
          %v761 = vunpack.c.l.b16 %v486
          %v762 = vunpack.c.h.b16 %v486
          %v763 = vunpack.c.l.b16 %v487
          %v764 = vunpack.c.h.b16 %v487
          %v765 = vunpack.c.l.b16 %v488
          %v766 = vunpack.c.h.b16 %v488
          %v767 = vunpack.c.l.b16 %v489
          %v768 = vunpack.c.h.b16 %v489
          %v769 = vunpack.c.l.b16 %v490
          %v770 = vunpack.c.h.b16 %v490
          %v771 = vunpack.c.l.b16 %v491
          %v772 = vunpack.c.h.b16 %v491
          %v773 = vunpack.c.l.b16 %v492
          %v774 = vunpack.c.h.b16 %v492
          %v775 = vunpack.c.l.b16 %v493
          %v776 = vunpack.c.h.b16 %v493
          %v777 = vunpack.c.l.b16 %v494
          %v778 = vunpack.c.h.b16 %v494
          %v779 = vunpack.c.l.b16 %v495
          %v780 = vunpack.c.h.b16 %v495
          %v781 = vunpack.c.l.b16 %v496
          %v782 = vunpack.c.h.b16 %v496
          %v783 = vunpack.c.l.b16 %v497
          %v784 = vunpack.c.h.b16 %v497
          %v785 = vunpack.c.l.b16 %v498
          %v786 = vunpack.c.h.b16 %v498
          %v787 = vunpack.c.l.b16 %v499
          %v788 = vunpack.c.h.b16 %v499
          %v789 = vunpack.c.l.b16 %v500
          %v790 = vunpack.c.h.b16 %v500
          %v791 = vunpack.c.l.b16 %v501
          %v792 = vunpack.c.h.b16 %v501
          %v793 = vunpack.c.l.b16 %v502
          %v794 = vunpack.c.h.b16 %v502
          %v795 = vunpack.c.l.b16 %v503
          %v796 = vunpack.c.h.b16 %v503
          %v797 = vunpack.c.l.b16 %v504
          %v798 = vunpack.c.h.b16 %v504
          %v799 = vunpack.c.l.b16 %v505
          %v800 = vunpack.c.h.b16 %v505
          %v801 = vunpack.c.l.b16 %v506
          %v802 = vunpack.c.h.b16 %v506
          %v803 = vunpack.c.l.b16 %v507
          %v804 = vunpack.c.h.b16 %v507
          %v805 = vunpack.c.l.b16 %v508
          %v806 = vunpack.c.h.b16 %v508
          %v807 = vunpack.c.l.b16 %v509
          %v808 = vunpack.c.h.b16 %v509
          %v809 = vunpack.c.l.b16 %v510
          %v810 = vunpack.c.h.b16 %v510
          %v811 = vunpack.c.l.b16 %v511
          %v812 = vunpack.c.h.b16 %v511
          %v813 = vunpack.c.l.b16 %v512
          %v814 = vunpack.c.h.b16 %v512
          %v815 = vunpack.c.l.b16 %v513
          %v816 = vunpack.c.h.b16 %v513
          %v817 = vunpack.c.l.b16 %v514
          %v818 = vunpack.c.h.b16 %v514
          %v819 = vunpack.c.l.b16 %v515
          %v820 = vunpack.c.h.b16 %v515
          %v821 = vunpack.c.l.b16 %v516
          %v822 = vunpack.c.h.b16 %v516
          %v823 = vunpack.c.l.b16 %v517
          %v824 = vunpack.c.h.b16 %v517
          %v825 = vunpack.c.l.b16 %v518
          %v826 = vunpack.c.h.b16 %v518
          %v827 = vunpack.c.l.b16 %v519
          %v828 = vunpack.c.h.b16 %v519
          %v829 = vunpack.c.l.b16 %v520
          %v830 = vunpack.c.h.b16 %v520
          %v831 = vunpack.c.l.b16 %v521
          %v832 = vunpack.c.h.b16 %v521
          %v833 = vunpack.c.l.b16 %v522
          %v834 = vunpack.c.h.b16 %v522
          %v835 = vunpack.c.l.b16 %v523
          %v836 = vunpack.c.h.b16 %v523
          %v837 = vunpack.c.l.b16 %v524
          %v838 = vunpack.c.h.b16 %v524
          %v839 = vunpack.c.l.b16 %v525
          %v840 = vunpack.c.h.b16 %v525
          %v841 = vunpack.c.l.b16 %v526
          %v842 = vunpack.c.h.b16 %v526
          %v843 = vunpack.c.l.b16 %v527
          %v844 = vunpack.c.h.b16 %v527
          %v845 = vunpack.c.l.b16 %v528
          %v846 = vunpack.c.h.b16 %v528
          %v847 = vunpack.c.l.b16 %v529
          %v848 = vunpack.c.h.b16 %v529
          %v849 = vunpack.c.l.b16 %v530
          %v850 = vunpack.c.h.b16 %v530
          %v851 = vunpack.c.l.b16 %v531
          %v852 = vunpack.c.h.b16 %v531
          %v853 = vunpack.c.l.b16 %v532
          %v854 = vunpack.c.h.b16 %v532
          %v855 = vunpack.c.l.b16 %v533
          %v856 = vunpack.c.h.b16 %v533
          %v857 = vunpack.c.l.b16 %v534
          %v858 = vunpack.c.h.b16 %v534
          %v859 = vunpack.c.l.b16 %v535
          %v860 = vunpack.c.h.b16 %v535
          %v861 = vunpack.c.l.b16 %v536
          %v862 = vunpack.c.h.b16 %v536
          %v863 = vunpack.c.l.b16 %v537
          %v864 = vunpack.c.h.b16 %v537
          %v865 = vunpack.c.l.b16 %v538
          %v866 = vunpack.c.h.b16 %v538
          %v867 = vunpack.c.l.b16 %v539
          %v868 = vunpack.c.h.b16 %v539
          %v869 = vunpack.c.l.b16 %v540
          %v870 = vunpack.c.h.b16 %v540
          %v871 = vunpack.c.l.b16 %v541
          %v872 = vunpack.c.h.b16 %v541
          %v873 = vunpack.c.l.b16 %v542
          %v874 = vunpack.c.h.b16 %v542
          %v875 = vunpack.c.l.b16 %v543
          %v876 = vunpack.c.h.b16 %v543
          %v877 = vunpack.c.l.b16 %v544
          %v878 = vunpack.c.h.b16 %v544
          %v879 = vunpack.c.l.b16 %v545
          %v880 = vunpack.c.h.b16 %v545
          %v881 = vunpack.c.l.b16 %v546
          %v882 = vunpack.c.h.b16 %v546
          %v883 = vunpack.c.l.b16 %v547
          %v884 = vunpack.c.h.b16 %v547
          %v885 = vunpack.c.l.b16 %v548
          %v886 = vunpack.c.h.b16 %v548
          %v887 = vunpack.c.l.b16 %v549
          %v888 = vunpack.c.h.b16 %v549
          %v889 = vunpack.c.l.b16 %v550
          %v890 = vunpack.c.h.b16 %v550
          %v891 = vunpack.c.l.b16 %v551
          %v892 = vunpack.c.h.b16 %v551
          %v893 = vunpack.c.l.b16 %v552
          %v894 = vunpack.c.h.b16 %v552
          %v895 = vunpack.c.l.b16 %v553
          %v896 = vunpack.c.h.b16 %v553
          %v897 = vunpack.c.l.b16 %v554
          %v898 = vunpack.c.h.b16 %v554
          %v899 = vunpack.c.l.b16 %v555
          %v900 = vunpack.c.h.b16 %v555
          %v901 = vunpack.c.l.b16 %v556
          %v902 = vunpack.c.h.b16 %v556
          %v903 = vunpack.c.l.b16 %v557
          %v904 = vunpack.c.h.b16 %v557
          %v905 = vunpack.c.l.b16 %v558
          %v906 = vunpack.c.h.b16 %v558
          %v907 = vunpack.c.l.b16 %v559
          %v908 = vunpack.c.h.b16 %v559
          %v909 = vunpack.c.l.b16 %v560
          %v910 = vunpack.c.h.b16 %v560
          %v911 = vunpack.c.l.b16 %v561
          %v912 = vunpack.c.h.b16 %v561
          %v913 = vunpack.c.l.b16 %v562
          %v914 = vunpack.c.h.b16 %v562
          %v915 = vunpack.c.l.b16 %v563
          %v916 = vunpack.c.h.b16 %v563
          %v917 = vunpack.c.l.b16 %v564
          %v918 = vunpack.c.h.b16 %v564
          %v919 = vunpack.c.l.b16 %v565
          %v920 = vunpack.c.h.b16 %v565
          %v921 = vunpack.c.l.b16 %v566
          %v922 = vunpack.c.h.b16 %v566
          %v923 = vunpack.c.l.b16 %v567
          %v924 = vunpack.c.h.b16 %v567
          %v925 = vunpack.c.l.b16 %v568
          %v926 = vunpack.c.h.b16 %v568
          %v927 = vunpack.c.l.b16 %v569
          %v928 = vunpack.c.h.b16 %v569
          %v929 = vunpack.c.l.b16 %v570
          %v930 = vunpack.c.h.b16 %v570
          %v931 = vunpack.c.l.b16 %v571
          %v932 = vunpack.c.h.b16 %v571
          %v933 = vunpack.c.l.b16 %v572
          %v934 = vunpack.c.h.b16 %v572
          %v935 = vunpack.c.l.b16 %v573
          %v936 = vunpack.c.h.b16 %v573
          %v937 = vunpack.c.l.b16 %v574
          %v938 = vunpack.c.h.b16 %v574
          %v939 = vunpack.c.l.b16 %v575
          %v940 = vunpack.c.h.b16 %v575
          %v941 = vunpack.c.l.b16 %v576
          %v942 = vunpack.c.h.b16 %v576
          %v943 = vunpack.c.l.b16 %v577
          %v944 = vunpack.c.h.b16 %v577
          %v945 = vunpack.c.l.b16 %v578
          %v946 = vunpack.c.h.b16 %v578
          %v947 = vunpack.c.l.b16 %v579
          %v948 = vunpack.c.h.b16 %v579
          %v949 = vunpack.c.l.b16 %v580
          %v950 = vunpack.c.h.b16 %v580
          %v951 = vunpack.c.l.b16 %v581
          %v952 = vunpack.c.h.b16 %v581
          %v953 = vunpack.c.l.b16 %v582
          %v954 = vunpack.c.h.b16 %v582
          %v955 = vunpack.c.l.b16 %v583
          %v956 = vunpack.c.h.b16 %v583
          %v957 = vunpack.c.l.b16 %v584
          %v958 = vunpack.c.h.b16 %v584
          %v959 = vunpack.c.l.b16 %v585
          %v960 = vunpack.c.h.b16 %v585
          %v961 = vunpack.c.l.b16 %v586
          %v962 = vunpack.c.h.b16 %v586
          %v963 = vunpack.c.l.b16 %v587
          %v964 = vunpack.c.h.b16 %v587
          %v965 = vunpack.c.l.b16 %v588
          %v966 = vunpack.c.h.b16 %v588
          %v967 = vunpack.c.l.b16 %v589
          %v968 = vunpack.c.h.b16 %v589
          %v969 = vunpack.c.l.b16 %v590
          %v970 = vunpack.c.h.b16 %v590
          %v971 = vunpack.c.l.b16 %v591
          %v972 = vunpack.c.h.b16 %v591
          %v973 = vunpack.c.l.b16 %v592
          %v974 = vunpack.c.h.b16 %v592
          %v975 = vunpack.c.l.b16 %v593
          %v976 = vunpack.c.h.b16 %v593
          %v977 = vunpack.c.l.b16 %v594
          %v978 = vunpack.c.h.b16 %v594
          %v979 = vunpack.c.l.b16 %v595
          %v980 = vunpack.c.h.b16 %v595
          %v981 = vunpack.c.l.b16 %v596
          %v982 = vunpack.c.h.b16 %v596
          %v983 = vunpack.c.l.b16 %v597
          %v984 = vunpack.c.h.b16 %v597
          %v985 = vunpack.c.l.b16 %v598
          %v986 = vunpack.c.h.b16 %v598
          %v987 = vunpack.c.l.b16 %v599
          %v988 = vunpack.c.h.b16 %v599
          %v989 = vunpack.c.l.b16 %v600
          %v990 = vunpack.c.h.b16 %v600
          %v991 = vunpack.c.l.b16 %v601
          %v992 = vunpack.c.h.b16 %v601
          %v993 = vunpack.c.l.b16 %v602
          %v994 = vunpack.c.h.b16 %v602
          %v995 = vunpack.c.l.b16 %v603
          %v996 = vunpack.c.h.b16 %v603
          %v997 = vunpack.c.l.b16 %v604
          %v998 = vunpack.c.h.b16 %v604
          %v999 = vpack.c.b16 %v747, %v743
          %v1000 = vpack.c.b16 %v748, %v744
          %v1001 = vpack.c.b16 %v749, %v745
          %v1002 = vpack.c.b16 %v750, %v746
          %v1003 = vpack.c.b16 %v755, %v751
          %v1004 = vpack.c.b16 %v756, %v752
          %v1005 = vpack.c.b16 %v757, %v753
          %v1006 = vpack.c.b16 %v758, %v754
          %v1007 = vpack.c.b16 %v763, %v759
          %v1008 = vpack.c.b16 %v764, %v760
          %v1009 = vpack.c.b16 %v765, %v761
          %v1010 = vpack.c.b16 %v766, %v762
          %v1011 = vpack.c.b16 %v771, %v767
          %v1012 = vpack.c.b16 %v772, %v768
          %v1013 = vpack.c.b16 %v773, %v769
          %v1014 = vpack.c.b16 %v774, %v770
          %v1015 = vpack.c.b16 %v779, %v775
          %v1016 = vpack.c.b16 %v780, %v776
          %v1017 = vpack.c.b16 %v781, %v777
          %v1018 = vpack.c.b16 %v782, %v778
          %v1019 = vpack.c.b16 %v787, %v783
          %v1020 = vpack.c.b16 %v788, %v784
          %v1021 = vpack.c.b16 %v789, %v785
          %v1022 = vpack.c.b16 %v790, %v786
          %v1023 = vpack.c.b16 %v795, %v791
          %v1024 = vpack.c.b16 %v796, %v792
          %v1025 = vpack.c.b16 %v797, %v793
          %v1026 = vpack.c.b16 %v798, %v794
          %v1027 = vpack.c.b16 %v803, %v799
          %v1028 = vpack.c.b16 %v804, %v800
          %v1029 = vpack.c.b16 %v805, %v801
          %v1030 = vpack.c.b16 %v806, %v802
          %v1031 = vpack.c.b16 %v811, %v807
          %v1032 = vpack.c.b16 %v812, %v808
          %v1033 = vpack.c.b16 %v813, %v809
          %v1034 = vpack.c.b16 %v814, %v810
          %v1035 = vpack.c.b16 %v819, %v815
          %v1036 = vpack.c.b16 %v820, %v816
          %v1037 = vpack.c.b16 %v821, %v817
          %v1038 = vpack.c.b16 %v822, %v818
          %v1039 = vpack.c.b16 %v827, %v823
          %v1040 = vpack.c.b16 %v828, %v824
          %v1041 = vpack.c.b16 %v829, %v825
          %v1042 = vpack.c.b16 %v830, %v826
          %v1043 = vpack.c.b16 %v835, %v831
          %v1044 = vpack.c.b16 %v836, %v832
          %v1045 = vpack.c.b16 %v837, %v833
          %v1046 = vpack.c.b16 %v838, %v834
          %v1047 = vpack.c.b16 %v843, %v839
          %v1048 = vpack.c.b16 %v844, %v840
          %v1049 = vpack.c.b16 %v845, %v841
          %v1050 = vpack.c.b16 %v846, %v842
          %v1051 = vpack.c.b16 %v851, %v847
          %v1052 = vpack.c.b16 %v852, %v848
          %v1053 = vpack.c.b16 %v853, %v849
          %v1054 = vpack.c.b16 %v854, %v850
          %v1055 = vpack.c.b16 %v859, %v855
          %v1056 = vpack.c.b16 %v860, %v856
          %v1057 = vpack.c.b16 %v861, %v857
          %v1058 = vpack.c.b16 %v862, %v858
          %v1059 = vpack.c.b16 %v867, %v863
          %v1060 = vpack.c.b16 %v868, %v864
          %v1061 = vpack.c.b16 %v869, %v865
          %v1062 = vpack.c.b16 %v870, %v866
          %v1063 = vpack.c.b16 %v875, %v871
          %v1064 = vpack.c.b16 %v876, %v872
          %v1065 = vpack.c.b16 %v877, %v873
          %v1066 = vpack.c.b16 %v878, %v874
          %v1067 = vpack.c.b16 %v883, %v879
          %v1068 = vpack.c.b16 %v884, %v880
          %v1069 = vpack.c.b16 %v885, %v881
          %v1070 = vpack.c.b16 %v886, %v882
          %v1071 = vpack.c.b16 %v891, %v887
          %v1072 = vpack.c.b16 %v892, %v888
          %v1073 = vpack.c.b16 %v893, %v889
          %v1074 = vpack.c.b16 %v894, %v890
          %v1075 = vpack.c.b16 %v899, %v895
          %v1076 = vpack.c.b16 %v900, %v896
          %v1077 = vpack.c.b16 %v901, %v897
          %v1078 = vpack.c.b16 %v902, %v898
          %v1079 = vpack.c.b16 %v907, %v903
          %v1080 = vpack.c.b16 %v908, %v904
          %v1081 = vpack.c.b16 %v909, %v905
          %v1082 = vpack.c.b16 %v910, %v906
          %v1083 = vpack.c.b16 %v915, %v911
          %v1084 = vpack.c.b16 %v916, %v912
          %v1085 = vpack.c.b16 %v917, %v913
          %v1086 = vpack.c.b16 %v918, %v914
          %v1087 = vpack.c.b16 %v923, %v919
          %v1088 = vpack.c.b16 %v924, %v920
          %v1089 = vpack.c.b16 %v925, %v921
          %v1090 = vpack.c.b16 %v926, %v922
          %v1091 = vpack.c.b16 %v931, %v927
          %v1092 = vpack.c.b16 %v932, %v928
          %v1093 = vpack.c.b16 %v933, %v929
          %v1094 = vpack.c.b16 %v934, %v930
          %v1095 = vpack.c.b16 %v939, %v935
          %v1096 = vpack.c.b16 %v940, %v936
          %v1097 = vpack.c.b16 %v941, %v937
          %v1098 = vpack.c.b16 %v942, %v938
          %v1099 = vpack.c.b16 %v947, %v943
          %v1100 = vpack.c.b16 %v948, %v944
          %v1101 = vpack.c.b16 %v949, %v945
          %v1102 = vpack.c.b16 %v950, %v946
          %v1103 = vpack.c.b16 %v955, %v951
          %v1104 = vpack.c.b16 %v956, %v952
          %v1105 = vpack.c.b16 %v957, %v953
          %v1106 = vpack.c.b16 %v958, %v954
          %v1107 = vpack.c.b16 %v963, %v959
          %v1108 = vpack.c.b16 %v964, %v960
          %v1109 = vpack.c.b16 %v965, %v961
          %v1110 = vpack.c.b16 %v966, %v962
          %v1111 = vpack.c.b16 %v971, %v967
          %v1112 = vpack.c.b16 %v972, %v968
          %v1113 = vpack.c.b16 %v973, %v969
          %v1114 = vpack.c.b16 %v974, %v970
          %v1115 = vpack.c.b16 %v979, %v975
          %v1116 = vpack.c.b16 %v980, %v976
          %v1117 = vpack.c.b16 %v981, %v977
          %v1118 = vpack.c.b16 %v982, %v978
          %v1119 = vpack.c.b16 %v987, %v983
          %v1120 = vpack.c.b16 %v988, %v984
          %v1121 = vpack.c.b16 %v989, %v985
          %v1122 = vpack.c.b16 %v990, %v986
          %v1123 = vpack.c.b16 %v995, %v991
          %v1124 = vpack.c.b16 %v996, %v992
          %v1125 = vpack.c.b16 %v997, %v993
          %v1126 = vpack.c.b16 %v998, %v994
          %1255 = vmatpush.bf16.msra.mxu0 %v1027
          %1256 = vmatpush.bf16.msra.mxu0 %v1023
          %1257 = vmatpush.bf16.msra.mxu0 %v1019
          %1258 = vmatpush.bf16.msra.mxu0 %v1015
          %1259 = vmatpush.bf16.msra.mxu0 %v1011
          %1260 = vmatpush.bf16.msra.mxu0 %v1007
          %1261 = vmatpush.bf16.msra.mxu0 %v1003
          %1262 = vmatpush.bf16.msra.mxu0 %v999
          %1263 = vmatmul.bf16.gmra.mxu0 %v473
          %v1264 = vpop.f32.mrf.mxu0
          %v1265 = vadd.f32 %v607, %v1264
          %v1266 = vpop.f32.mrf.mxu0
          %1267 = vdwg.mxu0
          %1268 = vmatpush.bf16.msra.mxu0 %v1059
          %1269 = vmatpush.bf16.msra.mxu0 %v1055
          %1270 = vmatpush.bf16.msra.mxu0 %v1051
          %1271 = vmatpush.bf16.msra.mxu0 %v1047
          %1272 = vmatpush.bf16.msra.mxu0 %v1043
          %1273 = vmatpush.bf16.msra.mxu0 %v1039
          %1274 = vmatpush.bf16.msra.mxu0 %v1035
          %1275 = vmatpush.bf16.msra.mxu0 %v1031
          %1276 = vmatmul.bf16.gmra.mxu0 %v474
          %v1277 = vpop.f32.mrf.mxu0
          %v1278 = vadd.f32 %v1265, %v1277
          %v1279 = vpop.f32.mrf.mxu0
          %1280 = vdwg.mxu0
          %1281 = vmatpush.bf16.msra.mxu0 %v1091
          %1282 = vmatpush.bf16.msra.mxu0 %v1087
          %1283 = vmatpush.bf16.msra.mxu0 %v1083
          %1284 = vmatpush.bf16.msra.mxu0 %v1079
          %1285 = vmatpush.bf16.msra.mxu0 %v1075
          %1286 = vmatpush.bf16.msra.mxu0 %v1071
          %1287 = vmatpush.bf16.msra.mxu0 %v1067
          %1288 = vmatpush.bf16.msra.mxu0 %v1063
          %1289 = vmatmul.bf16.gmra.mxu0 %v475
          %v1290 = vpop.f32.mrf.mxu0
          %v1291 = vadd.f32 %v1278, %v1290
          %v1292 = vpop.f32.mrf.mxu0
          %1293 = vdwg.mxu0
          %1294 = vmatpush.bf16.msra.mxu0 %v1123
          %1295 = vmatpush.bf16.msra.mxu0 %v1119
          %1296 = vmatpush.bf16.msra.mxu0 %v1115
          %1297 = vmatpush.bf16.msra.mxu0 %v1111
          %1298 = vmatpush.bf16.msra.mxu0 %v1107
          %1299 = vmatpush.bf16.msra.mxu0 %v1103
          %1300 = vmatpush.bf16.msra.mxu0 %v1099
          %1301 = vmatpush.bf16.msra.mxu0 %v1095
          %1302 = vmatmul.bf16.gmra.mxu0 %v476
          %v1303 = vpop.f32.mrf.mxu0
          %v1304 = vadd.f32 %v1291, %v1303
          %v1305 = vpop.f32.mrf.mxu0
          %1306 = vdwg.mxu0
          %1307 = vmatpush.bf16.msra.mxu0 %v1028
          %1308 = vmatpush.bf16.msra.mxu0 %v1024
          %1309 = vmatpush.bf16.msra.mxu0 %v1020
          %1310 = vmatpush.bf16.msra.mxu0 %v1016
          %1311 = vmatpush.bf16.msra.mxu0 %v1012
          %1312 = vmatpush.bf16.msra.mxu0 %v1008
          %1313 = vmatpush.bf16.msra.mxu0 %v1004
          %1314 = vmatpush.bf16.msra.mxu0 %v1000
          %1315 = vmatmul.bf16.gmra.mxu0 %v473
          %v1316 = vpop.f32.mrf.mxu0
          %v1317 = vadd.f32 %v608, %v1316
          %v1318 = vpop.f32.mrf.mxu0
          %1319 = vdwg.mxu0
          %1320 = vmatpush.bf16.msra.mxu0 %v1060
          %1321 = vmatpush.bf16.msra.mxu0 %v1056
          %1322 = vmatpush.bf16.msra.mxu0 %v1052
          %1323 = vmatpush.bf16.msra.mxu0 %v1048
          %1324 = vmatpush.bf16.msra.mxu0 %v1044
          %1325 = vmatpush.bf16.msra.mxu0 %v1040
          %1326 = vmatpush.bf16.msra.mxu0 %v1036
          %1327 = vmatpush.bf16.msra.mxu0 %v1032
          %1328 = vmatmul.bf16.gmra.mxu0 %v474
          %v1329 = vpop.f32.mrf.mxu0
          %v1330 = vadd.f32 %v1317, %v1329
          %v1331 = vpop.f32.mrf.mxu0
          %1332 = vdwg.mxu0
          %1333 = vmatpush.bf16.msra.mxu0 %v1092
          %1334 = vmatpush.bf16.msra.mxu0 %v1088
          %1335 = vmatpush.bf16.msra.mxu0 %v1084
          %1336 = vmatpush.bf16.msra.mxu0 %v1080
          %1337 = vmatpush.bf16.msra.mxu0 %v1076
          %1338 = vmatpush.bf16.msra.mxu0 %v1072
          %1339 = vmatpush.bf16.msra.mxu0 %v1068
          %1340 = vmatpush.bf16.msra.mxu0 %v1064
          %1341 = vmatmul.bf16.gmra.mxu0 %v475
          %v1342 = vpop.f32.mrf.mxu0
          %v1343 = vadd.f32 %v1330, %v1342
          %v1344 = vpop.f32.mrf.mxu0
          %1345 = vdwg.mxu0
          %1346 = vmatpush.bf16.msra.mxu0 %v1124
          %1347 = vmatpush.bf16.msra.mxu0 %v1120
          %1348 = vmatpush.bf16.msra.mxu0 %v1116
          %1349 = vmatpush.bf16.msra.mxu0 %v1112
          %1350 = vmatpush.bf16.msra.mxu0 %v1108
          %1351 = vmatpush.bf16.msra.mxu0 %v1104
          %1352 = vmatpush.bf16.msra.mxu0 %v1100
          %1353 = vmatpush.bf16.msra.mxu0 %v1096
          %1354 = vmatmul.bf16.gmra.mxu0 %v476
          %v1355 = vpop.f32.mrf.mxu0
          %v1356 = vadd.f32 %v1343, %v1355
          %v1357 = vpop.f32.mrf.mxu0
          %1358 = vdwg.mxu0
          %1359 = vmatpush.bf16.msra.mxu0 %v1029
          %1360 = vmatpush.bf16.msra.mxu0 %v1025
          %1361 = vmatpush.bf16.msra.mxu0 %v1021
          %1362 = vmatpush.bf16.msra.mxu0 %v1017
          %1363 = vmatpush.bf16.msra.mxu0 %v1013
          %1364 = vmatpush.bf16.msra.mxu0 %v1009
          %1365 = vmatpush.bf16.msra.mxu0 %v1005
          %1366 = vmatpush.bf16.msra.mxu0 %v1001
          %1367 = vmatmul.bf16.gmra.mxu0 %v473
          %v1368 = vpop.f32.mrf.mxu0
          %v1369 = vadd.f32 %v609, %v1368
          %v1370 = vpop.f32.mrf.mxu0
          %1371 = vdwg.mxu0
          %1372 = vmatpush.bf16.msra.mxu0 %v1061
          %1373 = vmatpush.bf16.msra.mxu0 %v1057
          %1374 = vmatpush.bf16.msra.mxu0 %v1053
          %1375 = vmatpush.bf16.msra.mxu0 %v1049
          %1376 = vmatpush.bf16.msra.mxu0 %v1045
          %1377 = vmatpush.bf16.msra.mxu0 %v1041
          %1378 = vmatpush.bf16.msra.mxu0 %v1037
          %1379 = vmatpush.bf16.msra.mxu0 %v1033
          %1380 = vmatmul.bf16.gmra.mxu0 %v474
          %v1381 = vpop.f32.mrf.mxu0
          %v1382 = vadd.f32 %v1369, %v1381
          %v1383 = vpop.f32.mrf.mxu0
          %1384 = vdwg.mxu0
          %1385 = vmatpush.bf16.msra.mxu0 %v1093
          %1386 = vmatpush.bf16.msra.mxu0 %v1089
          %1387 = vmatpush.bf16.msra.mxu0 %v1085
          %1388 = vmatpush.bf16.msra.mxu0 %v1081
          %1389 = vmatpush.bf16.msra.mxu0 %v1077
          %1390 = vmatpush.bf16.msra.mxu0 %v1073
          %1391 = vmatpush.bf16.msra.mxu0 %v1069
          %1392 = vmatpush.bf16.msra.mxu0 %v1065
          %1393 = vmatmul.bf16.gmra.mxu0 %v475
          %v1394 = vpop.f32.mrf.mxu0
          %v1395 = vadd.f32 %v1382, %v1394
          %v1396 = vpop.f32.mrf.mxu0
          %1397 = vdwg.mxu0
          %1398 = vmatpush.bf16.msra.mxu0 %v1125
          %1399 = vmatpush.bf16.msra.mxu0 %v1121
          %1400 = vmatpush.bf16.msra.mxu0 %v1117
          %1401 = vmatpush.bf16.msra.mxu0 %v1113
          %1402 = vmatpush.bf16.msra.mxu0 %v1109
          %1403 = vmatpush.bf16.msra.mxu0 %v1105
          %1404 = vmatpush.bf16.msra.mxu0 %v1101
          %1405 = vmatpush.bf16.msra.mxu0 %v1097
          %1406 = vmatmul.bf16.gmra.mxu0 %v476
          %v1407 = vpop.f32.mrf.mxu0
          %v1408 = vadd.f32 %v1395, %v1407
          %v1409 = vpop.f32.mrf.mxu0
          %1410 = vdwg.mxu0
          %1411 = vmatpush.bf16.msra.mxu0 %v1030
          %1412 = vmatpush.bf16.msra.mxu0 %v1026
          %1413 = vmatpush.bf16.msra.mxu0 %v1022
          %1414 = vmatpush.bf16.msra.mxu0 %v1018
          %1415 = vmatpush.bf16.msra.mxu0 %v1014
          %1416 = vmatpush.bf16.msra.mxu0 %v1010
          %1417 = vmatpush.bf16.msra.mxu0 %v1006
          %1418 = vmatpush.bf16.msra.mxu0 %v1002
          %1419 = vmatmul.bf16.gmra.mxu0 %v473
          %v1420 = vpop.f32.mrf.mxu0
          %v1421 = vadd.f32 %v610, %v1420
          %v1422 = vpop.f32.mrf.mxu0
          %1423 = vdwg.mxu0
          %1424 = vmatpush.bf16.msra.mxu0 %v1062
          %1425 = vmatpush.bf16.msra.mxu0 %v1058
          %1426 = vmatpush.bf16.msra.mxu0 %v1054
          %1427 = vmatpush.bf16.msra.mxu0 %v1050
          %1428 = vmatpush.bf16.msra.mxu0 %v1046
          %1429 = vmatpush.bf16.msra.mxu0 %v1042
          %1430 = vmatpush.bf16.msra.mxu0 %v1038
          %1431 = vmatpush.bf16.msra.mxu0 %v1034
          %1432 = vmatmul.bf16.gmra.mxu0 %v474
          %v1433 = vpop.f32.mrf.mxu0
          %v1434 = vadd.f32 %v1421, %v1433
          %v1435 = vpop.f32.mrf.mxu0
          %1436 = vdwg.mxu0
          %1437 = vmatpush.bf16.msra.mxu0 %v1094
          %1438 = vmatpush.bf16.msra.mxu0 %v1090
          %1439 = vmatpush.bf16.msra.mxu0 %v1086
          %1440 = vmatpush.bf16.msra.mxu0 %v1082
          %1441 = vmatpush.bf16.msra.mxu0 %v1078
          %1442 = vmatpush.bf16.msra.mxu0 %v1074
          %1443 = vmatpush.bf16.msra.mxu0 %v1070
          %1444 = vmatpush.bf16.msra.mxu0 %v1066
          %1445 = vmatmul.bf16.gmra.mxu0 %v475
          %v1446 = vpop.f32.mrf.mxu0
          %v1447 = vadd.f32 %v1434, %v1446
          %v1448 = vpop.f32.mrf.mxu0
          %1449 = vdwg.mxu0
          %1450 = vmatpush.bf16.msra.mxu0 %v1126
          %1451 = vmatpush.bf16.msra.mxu0 %v1122
          %1452 = vmatpush.bf16.msra.mxu0 %v1118
          %1453 = vmatpush.bf16.msra.mxu0 %v1114
          %1454 = vmatpush.bf16.msra.mxu0 %v1110
          %1455 = vmatpush.bf16.msra.mxu0 %v1106
          %1456 = vmatpush.bf16.msra.mxu0 %v1102
          %1457 = vmatpush.bf16.msra.mxu0 %v1098
          %1458 = vmatmul.bf16.gmra.mxu0 %v476
          %v1459 = vpop.f32.mrf.mxu0
          %v1460 = vadd.f32 %v1447, %v1459
          %v1461 = vpop.f32.mrf.mxu0
          %1462 = vdwg.mxu0
          %v1463 = vxor.u32 %v1304, 2147483648
          %v1464 = vmul.f32 %v1463, 1.442695
          %v1465 = vpow.pop %v1464
          %v1466 = vadd.f32 %v1465, 1.0
          %v1467 = vrcp.pop %v1466
          %v1468 = vmul.f32 %v1466, %v1467
          %v1469 = vsub.f32 1.0, %v1468
          %v1470 = vmul.f32 %v1467, %v1469
          %v1471 = vadd.f32 %v1467, %v1470
          %vm1472 = vweird.f32 %v1466
          %vm1473 = vweird.f32 %v1467
          %vm1474 = vmor %vm1472, %vm1473
          %v1475 = vsel %vm1474, %v1467, %v1471
          %v1476 = vand.u32 2147483647, %v1466
          %vm1477 = vcmp.eq.f32.partialorder %v1476, 8.507059e+37
          %v1478 = vand.u32 %v1466, 2147483648
          %v1479 = vor.u32 1.1754944e-38, %v1478
          %v1480 = vsel %vm1477, %v1479, %v1475
          %v1481 = vmul.f32 1.0, %v1480
          %v1482 = vxor.u32 %v1356, 2147483648
          %v1483 = vmul.f32 %v1482, 1.442695
          %v1484 = vpow.pop %v1483
          %v1485 = vadd.f32 %v1484, 1.0
          %v1486 = vrcp.pop %v1485
          %v1487 = vmul.f32 %v1485, %v1486
          %v1488 = vsub.f32 1.0, %v1487
          %v1489 = vmul.f32 %v1486, %v1488
          %v1490 = vadd.f32 %v1486, %v1489
          %vm1491 = vweird.f32 %v1485
          %vm1492 = vweird.f32 %v1486
          %vm1493 = vmor %vm1491, %vm1492
          %v1494 = vsel %vm1493, %v1486, %v1490
          %v1495 = vand.u32 2147483647, %v1485
          %vm1496 = vcmp.eq.f32.partialorder %v1495, 8.507059e+37
          %v1497 = vand.u32 %v1485, 2147483648
          %v1498 = vor.u32 1.1754944e-38, %v1497
          %v1499 = vsel %vm1496, %v1498, %v1494
          %v1500 = vmul.f32 1.0, %v1499
          %v1501 = vtanh.pop %v1408
          %v1502 = vxor.u32 %v1460, 2147483648
          %v1503 = vmul.f32 %v1502, 1.442695
          %v1504 = vpow.pop %v1503
          %v1505 = vadd.f32 %v1504, 1.0
          %v1506 = vrcp.pop %v1505
          %v1507 = vmul.f32 %v1505, %v1506
          %v1508 = vsub.f32 1.0, %v1507
          %v1509 = vmul.f32 %v1506, %v1508
          %v1510 = vadd.f32 %v1506, %v1509
          %vm1511 = vweird.f32 %v1505
          %vm1512 = vweird.f32 %v1506
          %vm1513 = vmor %vm1511, %vm1512
          %v1514 = vsel %vm1513, %v1506, %v1510
          %v1515 = vand.u32 2147483647, %v1505
          %vm1516 = vcmp.eq.f32.partialorder %v1515, 8.507059e+37
          %v1517 = vand.u32 %v1505, 2147483648
          %v1518 = vor.u32 1.1754944e-38, %v1517
          %v1519 = vsel %vm1516, %v1518, %v1514
          %v1520 = vmul.f32 1.0, %v1519
          %v1521 = vld [vmem:[#allocation6] sm:$0xff]
          %v1522 = vmul.f32 %v1500, %v1521
          %v1523 = vmul.f32 %v1481, %v1501
          %v1524 = vadd.f32 %v1522, %v1523
          %v1525 = vtanh.pop %v1524
          %v1526 = vmul.f32 %v1520, %v1525
          %1527 = vst [vmem:[#allocation14] sm:$0xff] %v1526
          %1528 = vst [vmem:[#allocation16] sm:$0xff] %v1524
          %v1529 = vpack.c.bf16 %v1526, %v1526
          %1530 = vst [vmem:[#allocation2] sm:$0xf] %v1529
        $region80: #{lm_model_step_pallas.1} parent=51 // pred_fallthru
          _
        %v1531 = vld [vmem:[#allocation2] sm:$0xf]
        %v1532 = vld [vmem:[%s414] sm:$0xf]
        %v1533 = vld [vmem:[%s414 + $0x4] sm:$0xf]
        %v1534 = vld [vmem:[%s414 + $0x8] sm:$0xf]
        %v1535 = vld [vmem:[%s414 + $0xc] sm:$0xf]
        %v1536 = vld [vmem:[%s414 + $0x10] sm:$0xf]
        %v1537 = vld [vmem:[%s414 + $0x14] sm:$0xf]
        %v1538 = vld [vmem:[%s414 + $0x18] sm:$0xf]
        %v1539 = vld [vmem:[%s414 + $0x1c] sm:$0xf]
        %v1540 = vld [vmem:[%s414 + $0x20] sm:$0xf]
        %v1541 = vld [vmem:[%s414 + $0x24] sm:$0xf]
        %v1542 = vld [vmem:[%s414 + $0x28] sm:$0xf]
        %v1543 = vld [vmem:[%s414 + $0x2c] sm:$0xf]
        %v1544 = vld [vmem:[%s414 + $0x30] sm:$0xf]
        %v1545 = vld [vmem:[%s414 + $0x34] sm:$0xf]
        %v1546 = vld [vmem:[%s414 + $0x38] sm:$0xf]
        %v1547 = vld [vmem:[%s414 + $0x3c] sm:$0xf]
        %v1548 = vld [vmem:[%s423] sm:$0x1]
        %v1550 = vperm.slane %v1548, 0
        %v1568 = vunpack.c.l.b16 %v1532
        %v1569 = vunpack.c.l.b16 %v1533
        %v1570 = vunpack.c.l.b16 %v1534
        %v1571 = vunpack.c.l.b16 %v1535
        %v1572 = vunpack.c.l.b16 %v1536
        %v1573 = vunpack.c.l.b16 %v1537
        %v1574 = vunpack.c.l.b16 %v1538
        %v1575 = vunpack.c.l.b16 %v1539
        %v1576 = vunpack.c.l.b16 %v1540
        %v1577 = vunpack.c.l.b16 %v1541
        %v1578 = vunpack.c.l.b16 %v1542
        %v1579 = vunpack.c.l.b16 %v1543
        %v1580 = vunpack.c.l.b16 %v1544
        %v1581 = vunpack.c.l.b16 %v1545
        %v1582 = vunpack.c.l.b16 %v1546
        %v1583 = vunpack.c.l.b16 %v1547
        %v1584 = vpack.c.b16 %v1569, %v1568
        %v1585 = vpack.c.b16 %v1571, %v1570
        %v1586 = vpack.c.b16 %v1573, %v1572
        %v1587 = vpack.c.b16 %v1575, %v1574
        %v1588 = vpack.c.b16 %v1577, %v1576
        %v1589 = vpack.c.b16 %v1579, %v1578
        %v1590 = vpack.c.b16 %v1581, %v1580
        %v1591 = vpack.c.b16 %v1583, %v1582
        %1600 = vmatpush.bf16.msra.mxu0 %v1591
        %1601 = vmatpush.bf16.msra.mxu0 %v1590
        %1602 = vmatpush.bf16.msra.mxu0 %v1589
        %1603 = vmatpush.bf16.msra.mxu0 %v1588
        %1604 = vmatpush.bf16.msra.mxu0 %v1587
        %1605 = vmatpush.bf16.msra.mxu0 %v1586
        %1606 = vmatpush.bf16.msra.mxu0 %v1585
        %1607 = vmatpush.bf16.msra.mxu0 %v1584
        %1608 = vmatmul.bf16.gmra.mxu0 %v1531
        %v1609 = vpop.f32.mrf.mxu0
        %v1610 = vadd.f32 %v1550, %v1609
        %v1611 = vpop.f32.mrf.mxu0
        %1612 = vdwg.mxu0
        %1613 = vst [vmem:[%s460] sm:$0xff] %v1610
        %s1614 = sand.u32 %s215, 1
        %s1615 = scalar_lea.sflag [#allocation5], %s1614
        %s1616 = sand.u32 %s215, 1
        %s1617 = smul.addr %s1616, 8
        %s1618 = scalar_lea.vmem [#allocation13], %s1617
        // Predicated region
        $region81: #{lm_model_step_pallas.1} parent=51 // pred_check
          %p1619 = pneg %p225
        $region82: #{lm_model_step_pallas.1} parent=51 // pred_check_branch
          %1621 = sbr.rel (%p1619) target = $region84
        $region83: #{lm_model_step_pallas.1} parent=51 // pred_region
          %1623 = vsyncadd %s1615, 0
          %s1624 = smul.addr %s29, 8
          %s1625 = scalar_lea.hbm %s8, %s1624
          %s1627 = sshll.u32 %s1618, 4
          %s1628 = int_to_ptr.vmem [resolvable:$true] %s1627
          %s1629 = sshll.u32 %s1625, 4
          %s1630 = int_to_ptr.hbm [resolvable:$true] %s1629
          %1632 = dma.vmem_to_hbm [thread:$0]  %s1628, 128, %s1630, %s1615
        $region84: #{lm_model_step_pallas.1} parent=51 // pred_fallthru
          _
        // Predicated region
        $region85: #{lm_model_step_pallas.1} parent=51 // pred_check
          %p1633 = pneg %p246
        $region86: #{lm_model_step_pallas.1} parent=51 // pred_check_branch
          %1635 = sbr.rel (%p1633) target = $region88
        $region87: #{lm_model_step_pallas.1} parent=51 // pred_region
          %1637 = vsyncadd [#allocation15], 0
          %s1639 = sshll.u32 [#allocation14], 4
          %s1640 = int_to_ptr.vmem [resolvable:$true] %s1639
          %s1641 = sshll.u32 %s9, 4
          %s1642 = int_to_ptr.hbm [resolvable:$true] %s1641
          %1644 = dma.vmem_to_hbm [thread:$0]  %s1640, 128, %s1642, [#allocation15]
        $region88: #{lm_model_step_pallas.1} parent=51 // pred_fallthru
          _
        // Predicated region
        $region89: #{lm_model_step_pallas.1} parent=51 // pred_check
          %p1645 = pneg %p267
        $region90: #{lm_model_step_pallas.1} parent=51 // pred_check_branch
          %1647 = sbr.rel (%p1645) target = $region92
        $region91: #{lm_model_step_pallas.1} parent=51 // pred_region
          %1649 = vsyncadd [#allocation15], 0
          %s1651 = sshll.u32 [#allocation16], 4
          %s1652 = int_to_ptr.vmem [resolvable:$true] %s1651
          %s1653 = sshll.u32 %s10, 4
          %s1654 = int_to_ptr.hbm [resolvable:$true] %s1653
          %1656 = dma.vmem_to_hbm [thread:$0]  %s1652, 128, %s1654, [#allocation15]
        $region92: #{lm_model_step_pallas.1} parent=51 // pred_fallthru
          _
        // Predicated region
        $region93: #{lm_model_step_pallas.1} parent=51 // pred_check
          %p1657 = pneg %p246
        $region94: #{lm_model_step_pallas.1} parent=51 // pred_check_branch
          %1659 = sbr.rel (%p1657) target = $region96
        $region95: #{lm_model_step_pallas.1} parent=51 // pred_region
          %1661 = dma.done [#allocation15], 128
        $region96: #{lm_model_step_pallas.1} parent=51 // pred_fallthru
          _
        // Predicated region
        $region97: #{lm_model_step_pallas.1} parent=51 // pred_check
          %p1662 = pneg %p267
        $region98: #{lm_model_step_pallas.1} parent=51 // pred_check_branch
          %1664 = sbr.rel (%p1662) target = $region100
        $region99: #{lm_model_step_pallas.1} parent=51 // pred_region
          %1666 = dma.done [#allocation15], 128
        $region100: #{lm_model_step_pallas.1} parent=51 // pred_fallthru
          _
      $region52: #{lm_model_step_pallas.1} parent=5 // pred_fallthru
        _
      %p1667 = scmp.le.s32.totalorder 2, %s24
      // Predicated region
      $region101: #{lm_model_step_pallas.1} parent=5 // pred_check
        %p1668 = pneg %p1667
      $region102: #{lm_model_step_pallas.1} parent=5 // pred_check_branch
        %1670 = sbr.rel (%p1668) target = $region104
      $region103: #{lm_model_step_pallas.1} parent=5 // pred_region
        %s1671 = ssub.s32 %s24, 2
        // Predicated region
        $region105: #{lm_model_step_pallas.1} parent=103 // pred_check
          %p1672 = pneg %p231
        $region106: #{lm_model_step_pallas.1} parent=103 // pred_check_branch
          %1674 = sbr.rel (%p1672) target = $region108
        $region107: #{lm_model_step_pallas.1} parent=103 // pred_region
          %s1675 = sand.u32 %s216, 1
          %s1676 = scalar_lea.sflag [#allocation5], %s1675
          %s1677 = sand.u32 %s216, 1
          %s1678 = smul.addr %s1677, 8
          %s1679 = scalar_lea.vmem [#allocation13], %s1678
          %1681 = dma.done %s1676, 128
        $region108: #{lm_model_step_pallas.1} parent=103 // pred_fallthru
          _
      $region104: #{lm_model_step_pallas.1} parent=5 // pred_fallthru
        _
    $region6: #{lm_model_step_pallas.1} parent=1 // loop_footer
      %s28 = sadd.s32 1, %s24
    $region7: #{lm_model_step_pallas.1} parent=1 // loop_footer_branch
      %23 = sbr.rel target = $region3
    $region8: #{lm_model_step_pallas.1} parent=1 // loop_exit
      _
    %1682 = vsyncpa [#allocation4], 1
    %s1683 = scalar_lea.sflag [#allocation4], 1
    %1684 = vsyncpa %s1683, 1
    %1685 = vsyncpa [#allocation7], 1
    %1686 = vsyncpa [#allocation10], 1
    %1687 = vsyncpa [#allocation5], 1
    %s1688 = scalar_lea.sflag [#allocation5], 1
    %1689 = vsyncpa %s1688, 1
    %1690 = vsyncpa [#allocation15], 1

</llo_original>
